<compile_context>
chip_gen: v5e
topology: v5e:2x2
jax: 0.10.0
libtpu: 0.0.40
codegen_flags: <defaults>
</compile_context>

<pallas_src>
import functools

import jax
import jax.numpy as jnp
from jax.experimental import pallas as pl
from jax.experimental.pallas import tpu as pltpu


_VMEM_BUDGET_BYTES = 32 * 1024 * 1024  # safe scoped-VMEM target on v5e/v6e/v7x


def _round_up(n: int, m: int) -> int:
    return ((n + m - 1) // m) * m


def _default_epilogue_dtype():
    """bf16 element-wise epilogue only on chips with a bf16 VPU (v6e/v7x)."""
    try:
        kind = jax.devices()[0].device_kind.lower()
    except Exception:
        return jnp.float32
    if ("v6" in kind) or ("v7" in kind):
        return jnp.bfloat16
    return jnp.float32


def _choose_tile_batch(N: int, D: int, requested=None,
                       vmem_budget_bytes=_VMEM_BUDGET_BYTES) -> int:
    """Batch-tile heuristic.

    Big enough to amortize per-grid-step overhead (target ~1024 rows on
    v5e/v6e), small enough that (a) the grid has >= 2 steps whenever N allows
    it so v7x megacore can shard the "parallel" axis across both TensorCores,
    and (b) double-buffered input/output tiles plus intermediates fit well
    inside the scoped-VMEM budget (v7x has only 64 MiB physical VMEM).
    """
    target = 1024 if requested is None else requested
    # f32 bytes per row: 2x double-buffered input tile + 2x output tile
    # + headroom for the widest intermediate activations.
    bytes_per_row = (2 + 2) * D * 4 + 2 * max(D, 64) * 4
    vmem_rows = max(8, (vmem_budget_bytes // 2) // bytes_per_row)
    tile = min(target, vmem_rows)
    if N > 16:  # keep at least two grid steps for v7x megacore
        tile = min(tile, _round_up(pl.cdiv(N, 2), 8))
    tile = max(8, min(_round_up(tile, 8), _round_up(N, 8)))
    return tile


def _autoencoder_kernel(x_ref,
                        w1, b1, w2, b2, w3, b3,   # encoder
                        w4, b4, w5, b5, w6, b6,   # decoder
                        out_ref, *, epilogue_dtype):
    """Full 6-layer MLP chain for one batch tile, entirely in VMEM."""
    h = x_ref[...]

    def linear(h, w_ref, b_ref, relu):
        # bf16 operands feed the MXU at native rate; f32 accumulation.
        y = jnp.dot(h.astype(jnp.bfloat16), w_ref[...],
                    preferred_element_type=jnp.float32)
        # Bias-add / ReLU in epilogue_dtype (bf16 on v6e/v7x, f32 on v5e).
        y = y.astype(epilogue_dtype) + b_ref[...]
        if relu:
            y = jnp.maximum(y, 0)
        return y

    # encoder
    h = linear(h, w1, b1, True)
    h = linear(h, w2, b2, True)
    h = linear(h, w3, b3, True)
    # decoder (last layer has no ReLU)
    h = linear(h, w4, b4, True)
    h = linear(h, w5, b5, True)
    y = linear(h, w6, b6, False)

    out_ref[...] = y.astype(out_ref.dtype)


def autoencoder_forward(x, params, *, tile_batch=None, epilogue_dtype=None,
                        out_dtype=None):
    """x: (N, D) float32. params: list of (W, b), W:(in,out), b:(1,out)."""
    N, D = x.shape
    if epilogue_dtype is None:
        epilogue_dtype = _default_epilogue_dtype()
    # Callers that can consume bf16 may pass out_dtype=jnp.bfloat16 to halve
    # output HBM traffic; default keeps the input dtype contract.
    if out_dtype is None:
        out_dtype = x.dtype

    tile = _choose_tile_batch(N, D, tile_batch)
    grid = (pl.cdiv(N, tile),)  # partial last block: Pallas masks the store

    # Weights cast to bf16 once here; biases to the epilogue dtype.  Constant
    # index_maps => DMA'd once, VMEM-resident across all batch tiles.
    weight_args = []
    weight_specs = []
    for (w, b) in params:
        for arr in (w.astype(jnp.bfloat16), b.astype(epilogue_dtype)):
            weight_args.append(arr)
            nd = arr.ndim
            weight_specs.append(
                pl.BlockSpec(arr.shape, lambda i, _nd=nd: (0,) * _nd))

    in_specs = [pl.BlockSpec((tile, D), lambda i: (i, 0))] + weight_specs
    out_spec = pl.BlockSpec((tile, D), lambda i: (i, 0))

    # Cost estimate for the real (unpadded) work; weights counted once.
    dims = [D] + [w.shape[1] for (w, _) in params]
    flops = 2 * N * sum(a * b for a, b in zip(dims[:-1], dims[1:]))
    weight_bytes = sum(w.size * 2 + b.size * jnp.dtype(epilogue_dtype).itemsize
                       for (w, b) in params)
    bytes_accessed = (N * D * x.dtype.itemsize
                      + N * D * jnp.dtype(out_dtype).itemsize
                      + weight_bytes)

    kernel = functools.partial(_autoencoder_kernel,
                               epilogue_dtype=epilogue_dtype)

    out = pl.pallas_call(
        kernel,
        out_shape=jax.ShapeDtypeStruct((N, D), out_dtype),
        grid_spec=pltpu.PrefetchScalarGridSpec(
            num_scalar_prefetch=0,
            grid=grid,
            in_specs=in_specs,
            out_specs=out_spec,
        ),
        compiler_params=pltpu.CompilerParams(
            dimension_semantics=("parallel",),
            vmem_limit_bytes=_VMEM_BUDGET_BYTES),
        cost_estimate=pl.CostEstimate(
            flops=flops, transcendentals=0, bytes_accessed=bytes_accessed),
    )(x, *weight_args)

    return out


def init_params(key, input_dim, encoder_dims=(64, 32, 16), decoder_dims=(32, 64)):
    """PyTorch-Linear-style init (uniform +-1/sqrt(fan_in)).
    Weights stored as (in_dim, out_dim); biases as (1, out_dim)."""
    dims = [input_dim] + list(encoder_dims) + list(decoder_dims) + [input_dim]
    params = []
    for i in range(len(dims) - 1):
        fan_in, fan_out = dims[i], dims[i + 1]
        key, kw, kb = jax.random.split(key, 3)
        bound = 1.0 / jnp.sqrt(fan_in)
        w = jax.random.uniform(kw, (fan_in, fan_out), jnp.float32, -bound, bound)
        b = jax.random.uniform(kb, (1, fan_out), jnp.float32, -bound, bound)
        params.append((w, b))
    return params


def reference_forward(x, params, *, matmul_dtype=jnp.float32,
                      epilogue_dtype=jnp.float32):
    """Pure-JAX reference.  With matmul_dtype=bf16 and the kernel's epilogue
    dtype it reproduces the kernel's arithmetic exactly."""
    h = x
    n_layers = len(params)
    for idx, (w, b) in enumerate(params):
        y = jnp.dot(h.astype(matmul_dtype), w.astype(matmul_dtype),
                    preferred_element_type=jnp.float32)
        y = y.astype(epilogue_dtype) + b.astype(epilogue_dtype)
        if idx != n_layers - 1:     # ReLU on every layer except the last
            y = jnp.maximum(y, 0)
        h = y
    return h.astype(x.dtype)


if __name__ == "__main__":
    key = jax.random.PRNGKey(0)
    k_x, k_p = jax.random.split(key)

    # D=128 keeps the output lane-dense; N=1000 is deliberately NOT a multiple
    # of the tile so the masked partial-block path and a multi-step "parallel"
    # grid (>= 2 steps, v7x megacore) are both exercised.
    N, D = 1000, 128
    x = jax.random.normal(k_x, (N, D), jnp.float32)
    params = init_params(k_p, D)

    out = jax.block_until_ready(autoencoder_forward(x, params))
    assert out.shape == (N, D) and out.dtype == x.dtype

    # Tight check against a reference with identical bf16-matmul / epilogue.
    epi = _default_epilogue_dtype()
    ref_exact = reference_forward(x, params, matmul_dtype=jnp.bfloat16,
                                  epilogue_dtype=epi)
    assert jnp.allclose(out, ref_exact, atol=5e-3, rtol=5e-3), \
        "mismatch vs matched bf16 reference"

    # Loose check against the pure-f32 reference (bf16 rounding only).
    ref_f32 = reference_forward(x, params)
    assert jnp.allclose(out, ref_f32, atol=1e-1, rtol=1e-1), \
        "mismatch vs f32 reference"

    print("KERNEL_OK")
</pallas_src>

<mosaic_0001>
module attributes {stable_mosaic.version = 11 : i64} {
  func.func @_autoencoder_kernel(%arg0: i32, %arg1: memref<504x128xf32, #tpu.memory_space<vmem>>, %arg2: memref<128x64xbf16, #tpu.memory_space<vmem>>, %arg3: memref<1x64xf32, #tpu.memory_space<vmem>>, %arg4: memref<64x32xbf16, #tpu.memory_space<vmem>>, %arg5: memref<1x32xf32, #tpu.memory_space<vmem>>, %arg6: memref<32x16xbf16, #tpu.memory_space<vmem>>, %arg7: memref<1x16xf32, #tpu.memory_space<vmem>>, %arg8: memref<16x32xbf16, #tpu.memory_space<vmem>>, %arg9: memref<1x32xf32, #tpu.memory_space<vmem>>, %arg10: memref<32x64xbf16, #tpu.memory_space<vmem>>, %arg11: memref<1x64xf32, #tpu.memory_space<vmem>>, %arg12: memref<64x128xbf16, #tpu.memory_space<vmem>>, %arg13: memref<1x128xf32, #tpu.memory_space<vmem>>, %arg14: memref<504x128xf32, #tpu.memory_space<vmem>>) attributes {dimension_semantics = [#tpu.dimension_semantics<parallel>], iteration_bounds = array<i64: 2>, scalar_prefetch = 0 : i64, scratch_operands = 0 : i64, tpu.core_type = #tpu.core_type<tc>, window_params = [{transform_indices = @transform_0, window_bounds = array<i64: 504, 128>}, {pipeline_mode = #tpu.pipeline_mode<synchronous>, transform_indices = @transform_1, window_bounds = array<i64: 128, 64>}, {pipeline_mode = #tpu.pipeline_mode<synchronous>, transform_indices = @transform_2, window_bounds = array<i64: 1, 64>}, {pipeline_mode = #tpu.pipeline_mode<synchronous>, transform_indices = @transform_3, window_bounds = array<i64: 64, 32>}, {pipeline_mode = #tpu.pipeline_mode<synchronous>, transform_indices = @transform_4, window_bounds = array<i64: 1, 32>}, {pipeline_mode = #tpu.pipeline_mode<synchronous>, transform_indices = @transform_5, window_bounds = array<i64: 32, 16>}, {pipeline_mode = #tpu.pipeline_mode<synchronous>, transform_indices = @transform_6, window_bounds = array<i64: 1, 16>}, {pipeline_mode = #tpu.pipeline_mode<synchronous>, transform_indices = @transform_7, window_bounds = array<i64: 16, 32>}, {pipeline_mode = #tpu.pipeline_mode<synchronous>, transform_indices = @transform_8, window_bounds = array<i64: 1, 32>}, {pipeline_mode = #tpu.pipeline_mode<synchronous>, transform_indices = @transform_9, window_bounds = array<i64: 32, 64>}, {pipeline_mode = #tpu.pipeline_mode<synchronous>, transform_indices = @transform_10, window_bounds = array<i64: 1, 64>}, {pipeline_mode = #tpu.pipeline_mode<synchronous>, transform_indices = @transform_11, window_bounds = array<i64: 64, 128>}, {pipeline_mode = #tpu.pipeline_mode<synchronous>, transform_indices = @transform_12, window_bounds = array<i64: 1, 128>}, {transform_indices = @transform_13, window_bounds = array<i64: 504, 128>}]} {
    %c0 = arith.constant 0 : index
    %c0_0 = arith.constant 0 : index
    %0 = vector.load %arg1[%c0, %c0_0] : memref<504x128xf32, #tpu.memory_space<vmem>>, vector<504x128xf32>
    %1 = arith.truncf %0 : vector<504x128xf32> to vector<504x128xbf16>
    %c0_1 = arith.constant 0 : index
    %c0_2 = arith.constant 0 : index
    %2 = vector.load %arg2[%c0_1, %c0_2] : memref<128x64xbf16, #tpu.memory_space<vmem>>, vector<128x64xbf16>
    %cst = arith.constant dense<0.000000e+00> : vector<504x64xf32>
    %3 = tpu.matmul %1, %2, %cst {dimension_numbers = #tpu.dot_dimension_numbers<[1], [0], [0], [1], [0, 0, 1, 1], [], []>} : vector<504x128xbf16>, vector<128x64xbf16>, vector<504x64xf32> -> vector<504x64xf32>
    %c0_3 = arith.constant 0 : index
    %c0_4 = arith.constant 0 : index
    %4 = vector.load %arg3[%c0_3, %c0_4] : memref<1x64xf32, #tpu.memory_space<vmem>>, vector<1x64xf32>
    %5 = vector.broadcast %4 : vector<1x64xf32> to vector<504x64xf32>
    %6 = arith.addf %3, %5 : vector<504x64xf32>
    %cst_5 = arith.constant 0.000000e+00 : f32
    %7 = vector.broadcast %cst_5 : f32 to vector<504x64xf32>
    %8 = arith.maximumf %6, %7 : vector<504x64xf32>
    %9 = arith.truncf %8 : vector<504x64xf32> to vector<504x64xbf16>
    %c0_6 = arith.constant 0 : index
    %c0_7 = arith.constant 0 : index
    %10 = vector.load %arg4[%c0_6, %c0_7] : memref<64x32xbf16, #tpu.memory_space<vmem>>, vector<64x32xbf16>
    %cst_8 = arith.constant dense<0.000000e+00> : vector<504x32xf32>
    %11 = tpu.matmul %9, %10, %cst_8 {dimension_numbers = #tpu.dot_dimension_numbers<[1], [0], [0], [1], [0, 0, 1, 1], [], []>} : vector<504x64xbf16>, vector<64x32xbf16>, vector<504x32xf32> -> vector<504x32xf32>
    %c0_9 = arith.constant 0 : index
    %c0_10 = arith.constant 0 : index
    %12 = vector.load %arg5[%c0_9, %c0_10] : memref<1x32xf32, #tpu.memory_space<vmem>>, vector<1x32xf32>
    %13 = vector.broadcast %12 : vector<1x32xf32> to vector<504x32xf32>
    %14 = arith.addf %11, %13 : vector<504x32xf32>
    %cst_11 = arith.constant 0.000000e+00 : f32
    %15 = vector.broadcast %cst_11 : f32 to vector<504x32xf32>
    %16 = arith.maximumf %14, %15 : vector<504x32xf32>
    %17 = arith.truncf %16 : vector<504x32xf32> to vector<504x32xbf16>
    %c0_12 = arith.constant 0 : index
    %c0_13 = arith.constant 0 : index
    %18 = vector.load %arg6[%c0_12, %c0_13] : memref<32x16xbf16, #tpu.memory_space<vmem>>, vector<32x16xbf16>
    %cst_14 = arith.constant dense<0.000000e+00> : vector<504x16xf32>
    %19 = tpu.matmul %17, %18, %cst_14 {dimension_numbers = #tpu.dot_dimension_numbers<[1], [0], [0], [1], [0, 0, 1, 1], [], []>} : vector<504x32xbf16>, vector<32x16xbf16>, vector<504x16xf32> -> vector<504x16xf32>
    %c0_15 = arith.constant 0 : index
    %c0_16 = arith.constant 0 : index
    %20 = vector.load %arg7[%c0_15, %c0_16] : memref<1x16xf32, #tpu.memory_space<vmem>>, vector<1x16xf32>
    %21 = vector.broadcast %20 : vector<1x16xf32> to vector<504x16xf32>
    %22 = arith.addf %19, %21 : vector<504x16xf32>
    %cst_17 = arith.constant 0.000000e+00 : f32
    %23 = vector.broadcast %cst_17 : f32 to vector<504x16xf32>
    %24 = arith.maximumf %22, %23 : vector<504x16xf32>
    %25 = arith.truncf %24 : vector<504x16xf32> to vector<504x16xbf16>
    %c0_18 = arith.constant 0 : index
    %c0_19 = arith.constant 0 : index
    %26 = vector.load %arg8[%c0_18, %c0_19] : memref<16x32xbf16, #tpu.memory_space<vmem>>, vector<16x32xbf16>
    %cst_20 = arith.constant dense<0.000000e+00> : vector<504x32xf32>
    %27 = tpu.matmul %25, %26, %cst_20 {dimension_numbers = #tpu.dot_dimension_numbers<[1], [0], [0], [1], [0, 0, 1, 1], [], []>} : vector<504x16xbf16>, vector<16x32xbf16>, vector<504x32xf32> -> vector<504x32xf32>
    %c0_21 = arith.constant 0 : index
    %c0_22 = arith.constant 0 : index
    %28 = vector.load %arg9[%c0_21, %c0_22] : memref<1x32xf32, #tpu.memory_space<vmem>>, vector<1x32xf32>
    %29 = vector.broadcast %28 : vector<1x32xf32> to vector<504x32xf32>
    %30 = arith.addf %27, %29 : vector<504x32xf32>
    %cst_23 = arith.constant 0.000000e+00 : f32
    %31 = vector.broadcast %cst_23 : f32 to vector<504x32xf32>
    %32 = arith.maximumf %30, %31 : vector<504x32xf32>
    %33 = arith.truncf %32 : vector<504x32xf32> to vector<504x32xbf16>
    %c0_24 = arith.constant 0 : index
    %c0_25 = arith.constant 0 : index
    %34 = vector.load %arg10[%c0_24, %c0_25] : memref<32x64xbf16, #tpu.memory_space<vmem>>, vector<32x64xbf16>
    %cst_26 = arith.constant dense<0.000000e+00> : vector<504x64xf32>
    %35 = tpu.matmul %33, %34, %cst_26 {dimension_numbers = #tpu.dot_dimension_numbers<[1], [0], [0], [1], [0, 0, 1, 1], [], []>} : vector<504x32xbf16>, vector<32x64xbf16>, vector<504x64xf32> -> vector<504x64xf32>
    %c0_27 = arith.constant 0 : index
    %c0_28 = arith.constant 0 : index
    %36 = vector.load %arg11[%c0_27, %c0_28] : memref<1x64xf32, #tpu.memory_space<vmem>>, vector<1x64xf32>
    %37 = vector.broadcast %36 : vector<1x64xf32> to vector<504x64xf32>
    %38 = arith.addf %35, %37 : vector<504x64xf32>
    %cst_29 = arith.constant 0.000000e+00 : f32
    %39 = vector.broadcast %cst_29 : f32 to vector<504x64xf32>
    %40 = arith.maximumf %38, %39 : vector<504x64xf32>
    %41 = arith.truncf %40 : vector<504x64xf32> to vector<504x64xbf16>
    %c0_30 = arith.constant 0 : index
    %c0_31 = arith.constant 0 : index
    %42 = vector.load %arg12[%c0_30, %c0_31] : memref<64x128xbf16, #tpu.memory_space<vmem>>, vector<64x128xbf16>
    %cst_32 = arith.constant dense<0.000000e+00> : vector<504x128xf32>
    %43 = tpu.matmul %41, %42, %cst_32 {dimension_numbers = #tpu.dot_dimension_numbers<[1], [0], [0], [1], [0, 0, 1, 1], [], []>} : vector<504x64xbf16>, vector<64x128xbf16>, vector<504x128xf32> -> vector<504x128xf32>
    %c0_33 = arith.constant 0 : index
    %c0_34 = arith.constant 0 : index
    %44 = vector.load %arg13[%c0_33, %c0_34] : memref<1x128xf32, #tpu.memory_space<vmem>>, vector<1x128xf32>
    %45 = vector.broadcast %44 : vector<1x128xf32> to vector<504x128xf32>
    %46 = arith.addf %43, %45 : vector<504x128xf32>
    %c0_35 = arith.constant 0 : index
    %c0_36 = arith.constant 0 : index
    %47 = vector.load %arg14[%c0_35, %c0_36] : memref<504x128xf32, #tpu.memory_space<vmem>>, vector<504x128xf32>
    tpu.vector_store %arg14[%c0_35, %c0_36], %46 {strides = array<i32>} : memref<504x128xf32, #tpu.memory_space<vmem>>, vector<504x128xf32>,
    return
  }
  func.func @transform_0(%arg0: i32) -> (i32, i32) {
    %c0_i32 = arith.constant 0 : i32
    %c0_i32_0 = arith.constant 0 : i32
    return %arg0, %c0_i32 : i32, i32
  }
  func.func @transform_1(%arg0: i32) -> (i32, i32) {
    %c0_i32 = arith.constant 0 : i32
    %c0_i32_0 = arith.constant 0 : i32
    %c0_i32_1 = arith.constant 0 : i32
    return %c0_i32, %c0_i32_0 : i32, i32
  }
  func.func @transform_2(%arg0: i32) -> (i32, i32) {
    %c0_i32 = arith.constant 0 : i32
    %c0_i32_0 = arith.constant 0 : i32
    %c0_i32_1 = arith.constant 0 : i32
    return %c0_i32, %c0_i32_0 : i32, i32
  }
  func.func @transform_3(%arg0: i32) -> (i32, i32) {
    %c0_i32 = arith.constant 0 : i32
    %c0_i32_0 = arith.constant 0 : i32
    %c0_i32_1 = arith.constant 0 : i32
    return %c0_i32, %c0_i32_0 : i32, i32
  }
  func.func @transform_4(%arg0: i32) -> (i32, i32) {
    %c0_i32 = arith.constant 0 : i32
    %c0_i32_0 = arith.constant 0 : i32
    %c0_i32_1 = arith.constant 0 : i32
    return %c0_i32, %c0_i32_0 : i32, i32
  }
  func.func @transform_5(%arg0: i32) -> (i32, i32) {
    %c0_i32 = arith.constant 0 : i32
    %c0_i32_0 = arith.constant 0 : i32
    %c0_i32_1 = arith.constant 0 : i32
    return %c0_i32, %c0_i32_0 : i32, i32
  }
  func.func @transform_6(%arg0: i32) -> (i32, i32) {
    %c0_i32 = arith.constant 0 : i32
    %c0_i32_0 = arith.constant 0 : i32
    %c0_i32_1 = arith.constant 0 : i32
    return %c0_i32, %c0_i32_0 : i32, i32
  }
  func.func @transform_7(%arg0: i32) -> (i32, i32) {
    %c0_i32 = arith.constant 0 : i32
    %c0_i32_0 = arith.constant 0 : i32
    %c0_i32_1 = arith.constant 0 : i32
    return %c0_i32, %c0_i32_0 : i32, i32
  }
  func.func @transform_8(%arg0: i32) -> (i32, i32) {
    %c0_i32 = arith.constant 0 : i32
    %c0_i32_0 = arith.constant 0 : i32
    %c0_i32_1 = arith.constant 0 : i32
    return %c0_i32, %c0_i32_0 : i32, i32
  }
  func.func @transform_9(%arg0: i32) -> (i32, i32) {
    %c0_i32 = arith.constant 0 : i32
    %c0_i32_0 = arith.constant 0 : i32
    %c0_i32_1 = arith.constant 0 : i32
    return %c0_i32, %c0_i32_0 : i32, i32
  }
  func.func @transform_10(%arg0: i32) -> (i32, i32) {
    %c0_i32 = arith.constant 0 : i32
    %c0_i32_0 = arith.constant 0 : i32
    %c0_i32_1 = arith.constant 0 : i32
    return %c0_i32, %c0_i32_0 : i32, i32
  }
  func.func @transform_11(%arg0: i32) -> (i32, i32) {
    %c0_i32 = arith.constant 0 : i32
    %c0_i32_0 = arith.constant 0 : i32
    %c0_i32_1 = arith.constant 0 : i32
    return %c0_i32, %c0_i32_0 : i32, i32
  }
  func.func @transform_12(%arg0: i32) -> (i32, i32) {
    %c0_i32 = arith.constant 0 : i32
    %c0_i32_0 = arith.constant 0 : i32
    %c0_i32_1 = arith.constant 0 : i32
    return %c0_i32, %c0_i32_0 : i32, i32
  }
  func.func @transform_13(%arg0: i32) -> (i32, i32) {
    %c0_i32 = arith.constant 0 : i32
    %c0_i32_0 = arith.constant 0 : i32
    return %arg0, %c0_i32 : i32, i32
  }
}

</mosaic_0001>

<llo_original>
// kernel: tpu_custom_call.1
$region0: #{tpu_custom_call.1}
  #allocation0 [shape = 'u32[]', space=smem, size = 0x4, offset = 0x4, fixed_abs, tag = 'smem constant byte address 0x4 - core index']
  #allocation1 [shape = 'u32[72,128]{1,0:T(1,128)}', space=vmem, size = 0x9000, scoped, tag = 'internal scratch']
  %s0 = inlined_call_operand.hbm [shape: f32[1000,128], index: 0, kind: input, shape index: {}]
  %s1 = inlined_call_operand.vmem [shape: bf16[128,64], index: 1, kind: input, shape index: {}]
  %s2 = inlined_call_operand.vmem [shape: f32[1,64], index: 2, kind: input, shape index: {}]
  %s3 = inlined_call_operand.vmem [shape: bf16[64,32], index: 3, kind: input, shape index: {}]
  %s4 = inlined_call_operand.vmem [shape: f32[1,32], index: 4, kind: input, shape index: {}]
  %s5 = inlined_call_operand.vmem [shape: bf16[32,16], index: 5, kind: input, shape index: {}]
  %s6 = inlined_call_operand.vmem [shape: f32[1,16], index: 6, kind: input, shape index: {}]
  %s7 = inlined_call_operand.vmem [shape: bf16[16,32], index: 7, kind: input, shape index: {}]
  %s8 = inlined_call_operand.vmem [shape: f32[1,32], index: 8, kind: input, shape index: {}]
  %s9 = inlined_call_operand.vmem [shape: bf16[32,64], index: 9, kind: input, shape index: {}]
  %s10 = inlined_call_operand.vmem [shape: f32[1,64], index: 10, kind: input, shape index: {}]
  %s11 = inlined_call_operand.vmem [shape: bf16[64,128], index: 11, kind: input, shape index: {}]
  %s12 = inlined_call_operand.vmem [shape: f32[1,128], index: 12, kind: input, shape index: {}]
  %s13 = inlined_call_operand.hbm [shape: f32[1000,128], index: 13, kind: output, shape index: {}]
  %s14 = sld [smem:[#allocation0]]
  $region89: #{tpu_custom_call.1} parent=0
    _
  %s16 = ssub.s32 1, %s14
  %s17 = scalar_select 0, %s16, %s14
  $region1: #{tpu_custom_call.1} parent=0
    #allocation2 [shape = 'u8[516096]{0}', space=vmem, size = 0x7e000, scoped, tag = 'input window, operand 0']
    #allocation3 [shape = 's32[2]{0}', space=sflag, size = 0x8, scoped, tag = 'scoped memory for tpu_custom_call.1']
    #allocation4 [shape = 's32[2]{0}', space=sflag, size = 0x8, scoped, tag = 'scoped memory for tpu_custom_call.1']
    #allocation5 [shape = 'u8[516096]{0}', space=vmem, size = 0x7e000, scoped, tag = 'output window, operand 0']
    %18 = vsyncpa [#allocation3], 0
    %s19 = scalar_lea.sflag [#allocation3], 1
    %20 = vsyncpa %s19, 0
    %21 = vsyncpa [#allocation4], 0
    %s22 = scalar_lea.sflag [#allocation4], 1
    %23 = vsyncpa %s22, 0
    loop: start=0, step=1, limit=4
    $region2: #{tpu_custom_call.1} parent=1 // loop_pre_header
      _
    $region3: #{tpu_custom_call.1} parent=1 // loop_header
      %s25 = sphi 0, %s29
      %p26 = scmp.ge.s32.totalorder %s25, 4
      %s35 = sphi 0, %s37
      %s38 = sphi 0, %s35
      %s39 = sphi 0, %s38
      %s55 = sphi 0, %s39
      %s59 = sphi 0, %s59
      %s61 = sphi 0, %s59
      %s62 = sphi 0, %s61
      %s76 = sphi 0, %s62
      %s80 = sphi 0, %s80
      %s82 = sphi 0, %s80
      %s83 = sphi 0, %s82
      %s97 = sphi 0, %s83
      %s101 = sphi 0, %s101
      %s103 = sphi 0, %s101
      %s104 = sphi 0, %s103
      %s118 = sphi 0, %s104
      %s122 = sphi 0, %s122
      %s124 = sphi 0, %s122
      %s125 = sphi 0, %s124
      %s139 = sphi 0, %s125
      %s143 = sphi 0, %s143
      %s145 = sphi 0, %s143
      %s146 = sphi 0, %s145
      %s160 = sphi 0, %s146
      %s164 = sphi 0, %s164
      %s166 = sphi 0, %s164
      %s167 = sphi 0, %s166
      %s181 = sphi 0, %s167
      %s185 = sphi 0, %s185
      %s187 = sphi 0, %s185
      %s188 = sphi 0, %s187
      %s202 = sphi 0, %s188
      %s206 = sphi 0, %s206
      %s208 = sphi 0, %s206
      %s209 = sphi 0, %s208
      %s223 = sphi 0, %s209
      %s227 = sphi 0, %s227
      %s229 = sphi 0, %s227
      %s230 = sphi 0, %s229
      %s244 = sphi 0, %s230
      %s248 = sphi 0, %s248
      %s250 = sphi 0, %s248
      %s251 = sphi 0, %s250
      %s265 = sphi 0, %s251
      %s269 = sphi 0, %s269
      %s271 = sphi 0, %s269
      %s272 = sphi 0, %s271
      %s286 = sphi 0, %s272
      %s290 = sphi 0, %s290
      %s292 = sphi 0, %s290
      %s293 = sphi 0, %s292
      %s307 = sphi 0, %s293
      %s313 = sphi 0, %s315
      %s316 = sphi 0, %s313
      %s317 = sphi 0, %s316
      %s333 = sphi 0, %s317
    $region4: #{tpu_custom_call.1} parent=1 // loop_header_branch
      %28 = sbr.rel (%p26) target = $region8
    $region5: #{tpu_custom_call.1} parent=1 // loop_body
      %s30 = ssub.s32 %s25, 1
      %s31 = ssub.s32 %s25, 2
      %s32 = sadd.s32 %s25, 1
      %s33 = ssub.s32 %s25, %s32
      %p34 = scmp.eq.s32.totalorder %s33, 0
      %s36 = sadd.s32 %s35, 1
      %s37 = scalar_select %p34, %s35, %s36
      %p40 = pneg %p34
      %p41 = scmp.eq.s32.totalorder %s25, 1
      %p42 = por %p40, %p41
      %p43 = scmp.ne.s32.totalorder %s35, %s38
      %p44 = scmp.eq.s32.totalorder %s25, 0
      %p45 = por %p43, %p44
      %p46 = scmp.ne.s32.totalorder %s35, %s38
      %p47 = scmp.eq.s32.totalorder %s30, 1
      %p48 = por %p46, %p47
      %p49 = scmp.ne.s32.totalorder %s38, %s39
      %p50 = scmp.eq.s32.totalorder %s30, 0
      %p51 = por %p49, %p50
      %p52 = scmp.ne.s32.totalorder %s38, %s39
      %p53 = scmp.eq.s32.totalorder %s31, 1
      %p54 = por %p52, %p53
      %p56 = scmp.ne.s32.totalorder %s39, %s55
      %p57 = scmp.eq.s32.totalorder %s31, 0
      %p58 = por %p56, %p57
      %s60 = sadd.s32 %s59, 1
      %p63 = scmp.eq.s32.totalorder %s25, 1
      %p64 = scmp.ne.s32.totalorder %s59, %s61
      %p65 = scmp.eq.s32.totalorder %s25, 0
      %p66 = por %p64, %p65
      %p67 = scmp.ne.s32.totalorder %s59, %s61
      %p68 = scmp.eq.s32.totalorder %s30, 1
      %p69 = por %p67, %p68
      %p70 = scmp.ne.s32.totalorder %s61, %s62
      %p71 = scmp.eq.s32.totalorder %s30, 0
      %p72 = por %p70, %p71
      %p73 = scmp.ne.s32.totalorder %s61, %s62
      %p74 = scmp.eq.s32.totalorder %s31, 1
      %p75 = por %p73, %p74
      %p77 = scmp.ne.s32.totalorder %s62, %s76
      %p78 = scmp.eq.s32.totalorder %s31, 0
      %p79 = por %p77, %p78
      %s81 = sadd.s32 %s80, 1
      %p84 = scmp.eq.s32.totalorder %s25, 1
      %p85 = scmp.ne.s32.totalorder %s80, %s82
      %p86 = scmp.eq.s32.totalorder %s25, 0
      %p87 = por %p85, %p86
      %p88 = scmp.ne.s32.totalorder %s80, %s82
      %p89 = scmp.eq.s32.totalorder %s30, 1
      %p90 = por %p88, %p89
      %p91 = scmp.ne.s32.totalorder %s82, %s83
      %p92 = scmp.eq.s32.totalorder %s30, 0
      %p93 = por %p91, %p92
      %p94 = scmp.ne.s32.totalorder %s82, %s83
      %p95 = scmp.eq.s32.totalorder %s31, 1
      %p96 = por %p94, %p95
      %p98 = scmp.ne.s32.totalorder %s83, %s97
      %p99 = scmp.eq.s32.totalorder %s31, 0
      %p100 = por %p98, %p99
      %s102 = sadd.s32 %s101, 1
      %p105 = scmp.eq.s32.totalorder %s25, 1
      %p106 = scmp.ne.s32.totalorder %s101, %s103
      %p107 = scmp.eq.s32.totalorder %s25, 0
      %p108 = por %p106, %p107
      %p109 = scmp.ne.s32.totalorder %s101, %s103
      %p110 = scmp.eq.s32.totalorder %s30, 1
      %p111 = por %p109, %p110
      %p112 = scmp.ne.s32.totalorder %s103, %s104
      %p113 = scmp.eq.s32.totalorder %s30, 0
      %p114 = por %p112, %p113
      %p115 = scmp.ne.s32.totalorder %s103, %s104
      %p116 = scmp.eq.s32.totalorder %s31, 1
      %p117 = por %p115, %p116
      %p119 = scmp.ne.s32.totalorder %s104, %s118
      %p120 = scmp.eq.s32.totalorder %s31, 0
      %p121 = por %p119, %p120
      %s123 = sadd.s32 %s122, 1
      %p126 = scmp.eq.s32.totalorder %s25, 1
      %p127 = scmp.ne.s32.totalorder %s122, %s124
      %p128 = scmp.eq.s32.totalorder %s25, 0
      %p129 = por %p127, %p128
      %p130 = scmp.ne.s32.totalorder %s122, %s124
      %p131 = scmp.eq.s32.totalorder %s30, 1
      %p132 = por %p130, %p131
      %p133 = scmp.ne.s32.totalorder %s124, %s125
      %p134 = scmp.eq.s32.totalorder %s30, 0
      %p135 = por %p133, %p134
      %p136 = scmp.ne.s32.totalorder %s124, %s125
      %p137 = scmp.eq.s32.totalorder %s31, 1
      %p138 = por %p136, %p137
      %p140 = scmp.ne.s32.totalorder %s125, %s139
      %p141 = scmp.eq.s32.totalorder %s31, 0
      %p142 = por %p140, %p141
      %s144 = sadd.s32 %s143, 1
      %p147 = scmp.eq.s32.totalorder %s25, 1
      %p148 = scmp.ne.s32.totalorder %s143, %s145
      %p149 = scmp.eq.s32.totalorder %s25, 0
      %p150 = por %p148, %p149
      %p151 = scmp.ne.s32.totalorder %s143, %s145
      %p152 = scmp.eq.s32.totalorder %s30, 1
      %p153 = por %p151, %p152
      %p154 = scmp.ne.s32.totalorder %s145, %s146
      %p155 = scmp.eq.s32.totalorder %s30, 0
      %p156 = por %p154, %p155
      %p157 = scmp.ne.s32.totalorder %s145, %s146
      %p158 = scmp.eq.s32.totalorder %s31, 1
      %p159 = por %p157, %p158
      %p161 = scmp.ne.s32.totalorder %s146, %s160
      %p162 = scmp.eq.s32.totalorder %s31, 0
      %p163 = por %p161, %p162
      %s165 = sadd.s32 %s164, 1
      %p168 = scmp.eq.s32.totalorder %s25, 1
      %p169 = scmp.ne.s32.totalorder %s164, %s166
      %p170 = scmp.eq.s32.totalorder %s25, 0
      %p171 = por %p169, %p170
      %p172 = scmp.ne.s32.totalorder %s164, %s166
      %p173 = scmp.eq.s32.totalorder %s30, 1
      %p174 = por %p172, %p173
      %p175 = scmp.ne.s32.totalorder %s166, %s167
      %p176 = scmp.eq.s32.totalorder %s30, 0
      %p177 = por %p175, %p176
      %p178 = scmp.ne.s32.totalorder %s166, %s167
      %p179 = scmp.eq.s32.totalorder %s31, 1
      %p180 = por %p178, %p179
      %p182 = scmp.ne.s32.totalorder %s167, %s181
      %p183 = scmp.eq.s32.totalorder %s31, 0
      %p184 = por %p182, %p183
      %s186 = sadd.s32 %s185, 1
      %p189 = scmp.eq.s32.totalorder %s25, 1
      %p190 = scmp.ne.s32.totalorder %s185, %s187
      %p191 = scmp.eq.s32.totalorder %s25, 0
      %p192 = por %p190, %p191
      %p193 = scmp.ne.s32.totalorder %s185, %s187
      %p194 = scmp.eq.s32.totalorder %s30, 1
      %p195 = por %p193, %p194
      %p196 = scmp.ne.s32.totalorder %s187, %s188
      %p197 = scmp.eq.s32.totalorder %s30, 0
      %p198 = por %p196, %p197
      %p199 = scmp.ne.s32.totalorder %s187, %s188
      %p200 = scmp.eq.s32.totalorder %s31, 1
      %p201 = por %p199, %p200
      %p203 = scmp.ne.s32.totalorder %s188, %s202
      %p204 = scmp.eq.s32.totalorder %s31, 0
      %p205 = por %p203, %p204
      %s207 = sadd.s32 %s206, 1
      %p210 = scmp.eq.s32.totalorder %s25, 1
      %p211 = scmp.ne.s32.totalorder %s206, %s208
      %p212 = scmp.eq.s32.totalorder %s25, 0
      %p213 = por %p211, %p212
      %p214 = scmp.ne.s32.totalorder %s206, %s208
      %p215 = scmp.eq.s32.totalorder %s30, 1
      %p216 = por %p214, %p215
      %p217 = scmp.ne.s32.totalorder %s208, %s209
      %p218 = scmp.eq.s32.totalorder %s30, 0
      %p219 = por %p217, %p218
      %p220 = scmp.ne.s32.totalorder %s208, %s209
      %p221 = scmp.eq.s32.totalorder %s31, 1
      %p222 = por %p220, %p221
      %p224 = scmp.ne.s32.totalorder %s209, %s223
      %p225 = scmp.eq.s32.totalorder %s31, 0
      %p226 = por %p224, %p225
      %s228 = sadd.s32 %s227, 1
      %p231 = scmp.eq.s32.totalorder %s25, 1
      %p232 = scmp.ne.s32.totalorder %s227, %s229
      %p233 = scmp.eq.s32.totalorder %s25, 0
      %p234 = por %p232, %p233
      %p235 = scmp.ne.s32.totalorder %s227, %s229
      %p236 = scmp.eq.s32.totalorder %s30, 1
      %p237 = por %p235, %p236
      %p238 = scmp.ne.s32.totalorder %s229, %s230
      %p239 = scmp.eq.s32.totalorder %s30, 0
      %p240 = por %p238, %p239
      %p241 = scmp.ne.s32.totalorder %s229, %s230
      %p242 = scmp.eq.s32.totalorder %s31, 1
      %p243 = por %p241, %p242
      %p245 = scmp.ne.s32.totalorder %s230, %s244
      %p246 = scmp.eq.s32.totalorder %s31, 0
      %p247 = por %p245, %p246
      %s249 = sadd.s32 %s248, 1
      %p252 = scmp.eq.s32.totalorder %s25, 1
      %p253 = scmp.ne.s32.totalorder %s248, %s250
      %p254 = scmp.eq.s32.totalorder %s25, 0
      %p255 = por %p253, %p254
      %p256 = scmp.ne.s32.totalorder %s248, %s250
      %p257 = scmp.eq.s32.totalorder %s30, 1
      %p258 = por %p256, %p257
      %p259 = scmp.ne.s32.totalorder %s250, %s251
      %p260 = scmp.eq.s32.totalorder %s30, 0
      %p261 = por %p259, %p260
      %p262 = scmp.ne.s32.totalorder %s250, %s251
      %p263 = scmp.eq.s32.totalorder %s31, 1
      %p264 = por %p262, %p263
      %p266 = scmp.ne.s32.totalorder %s251, %s265
      %p267 = scmp.eq.s32.totalorder %s31, 0
      %p268 = por %p266, %p267
      %s270 = sadd.s32 %s269, 1
      %p273 = scmp.eq.s32.totalorder %s25, 1
      %p274 = scmp.ne.s32.totalorder %s269, %s271
      %p275 = scmp.eq.s32.totalorder %s25, 0
      %p276 = por %p274, %p275
      %p277 = scmp.ne.s32.totalorder %s269, %s271
      %p278 = scmp.eq.s32.totalorder %s30, 1
      %p279 = por %p277, %p278
      %p280 = scmp.ne.s32.totalorder %s271, %s272
      %p281 = scmp.eq.s32.totalorder %s30, 0
      %p282 = por %p280, %p281
      %p283 = scmp.ne.s32.totalorder %s271, %s272
      %p284 = scmp.eq.s32.totalorder %s31, 1
      %p285 = por %p283, %p284
      %p287 = scmp.ne.s32.totalorder %s272, %s286
      %p288 = scmp.eq.s32.totalorder %s31, 0
      %p289 = por %p287, %p288
      %s291 = sadd.s32 %s290, 1
      %p294 = scmp.eq.s32.totalorder %s25, 1
      %p295 = scmp.ne.s32.totalorder %s290, %s292
      %p296 = scmp.eq.s32.totalorder %s25, 0
      %p297 = por %p295, %p296
      %p298 = scmp.ne.s32.totalorder %s290, %s292
      %p299 = scmp.eq.s32.totalorder %s30, 1
      %p300 = por %p298, %p299
      %p301 = scmp.ne.s32.totalorder %s292, %s293
      %p302 = scmp.eq.s32.totalorder %s30, 0
      %p303 = por %p301, %p302
      %p304 = scmp.ne.s32.totalorder %s292, %s293
      %p305 = scmp.eq.s32.totalorder %s31, 1
      %p306 = por %p304, %p305
      %p308 = scmp.ne.s32.totalorder %s293, %s307
      %p309 = scmp.eq.s32.totalorder %s31, 0
      %p310 = por %p308, %p309
      %s311 = ssub.s32 %s25, %s32
      %p312 = scmp.eq.s32.totalorder %s311, 0
      %s314 = sadd.s32 %s313, 1
      %s315 = scalar_select %p312, %s313, %s314
      %p318 = pneg %p312
      %p319 = scmp.eq.s32.totalorder %s25, 1
      %p320 = por %p318, %p319
      %p321 = scmp.ne.s32.totalorder %s313, %s316
      %p322 = scmp.eq.s32.totalorder %s25, 0
      %p323 = por %p321, %p322
      %p324 = scmp.ne.s32.totalorder %s313, %s316
      %p325 = scmp.eq.s32.totalorder %s30, 1
      %p326 = por %p324, %p325
      %p327 = scmp.ne.s32.totalorder %s316, %s317
      %p328 = scmp.eq.s32.totalorder %s30, 0
      %p329 = por %p327, %p328
      %p330 = scmp.ne.s32.totalorder %s316, %s317
      %p331 = scmp.eq.s32.totalorder %s31, 1
      %p332 = por %p330, %p331
      %p334 = scmp.ne.s32.totalorder %s317, %s333
      %p335 = scmp.eq.s32.totalorder %s31, 0
      %p336 = por %p334, %p335
      %p337 = scmp.le.s32.totalorder 1, %s25
      %p338 = scmp.lt.s32.totalorder %s25, 3
      %p339 = pnand %p337, %p338
      %p340 = pneg %p339
      // Predicated region
      $region9: #{tpu_custom_call.1} parent=5 // pred_check
        _
      $region10: #{tpu_custom_call.1} parent=5 // pred_check_branch
        %342 = sbr.rel (%p339) target = $region12
      $region11: #{tpu_custom_call.1} parent=5 // pred_region
        %s343 = ssub.s32 %s25, 1
        // Predicated region
        $region13: #{tpu_custom_call.1} parent=11 // pred_check
          %p344 = pneg %p72
        $region14: #{tpu_custom_call.1} parent=11 // pred_check_branch
          %346 = sbr.rel (%p344) target = $region16
        $region15: #{tpu_custom_call.1} parent=11 // pred_region
          _
        $region16: #{tpu_custom_call.1} parent=11 // pred_fallthru
          _
        // Predicated region
        $region17: #{tpu_custom_call.1} parent=11 // pred_check
          %p347 = pneg %p93
        $region18: #{tpu_custom_call.1} parent=11 // pred_check_branch
          %349 = sbr.rel (%p347) target = $region20
        $region19: #{tpu_custom_call.1} parent=11 // pred_region
          _
        $region20: #{tpu_custom_call.1} parent=11 // pred_fallthru
          _
        // Predicated region
        $region21: #{tpu_custom_call.1} parent=11 // pred_check
          %p350 = pneg %p114
        $region22: #{tpu_custom_call.1} parent=11 // pred_check_branch
          %352 = sbr.rel (%p350) target = $region24
        $region23: #{tpu_custom_call.1} parent=11 // pred_region
          _
        $region24: #{tpu_custom_call.1} parent=11 // pred_fallthru
          _
        // Predicated region
        $region25: #{tpu_custom_call.1} parent=11 // pred_check
          %p353 = pneg %p135
        $region26: #{tpu_custom_call.1} parent=11 // pred_check_branch
          %355 = sbr.rel (%p353) target = $region28
        $region27: #{tpu_custom_call.1} parent=11 // pred_region
          _
        $region28: #{tpu_custom_call.1} parent=11 // pred_fallthru
          _
        // Predicated region
        $region29: #{tpu_custom_call.1} parent=11 // pred_check
          %p356 = pneg %p156
        $region30: #{tpu_custom_call.1} parent=11 // pred_check_branch
          %358 = sbr.rel (%p356) target = $region32
        $region31: #{tpu_custom_call.1} parent=11 // pred_region
          _
        $region32: #{tpu_custom_call.1} parent=11 // pred_fallthru
          _
        // Predicated region
        $region33: #{tpu_custom_call.1} parent=11 // pred_check
          %p359 = pneg %p177
        $region34: #{tpu_custom_call.1} parent=11 // pred_check_branch
          %361 = sbr.rel (%p359) target = $region36
        $region35: #{tpu_custom_call.1} parent=11 // pred_region
          _
        $region36: #{tpu_custom_call.1} parent=11 // pred_fallthru
          _
        // Predicated region
        $region37: #{tpu_custom_call.1} parent=11 // pred_check
          %p362 = pneg %p198
        $region38: #{tpu_custom_call.1} parent=11 // pred_check_branch
          %364 = sbr.rel (%p362) target = $region40
        $region39: #{tpu_custom_call.1} parent=11 // pred_region
          _
        $region40: #{tpu_custom_call.1} parent=11 // pred_fallthru
          _
        // Predicated region
        $region41: #{tpu_custom_call.1} parent=11 // pred_check
          %p365 = pneg %p219
        $region42: #{tpu_custom_call.1} parent=11 // pred_check_branch
          %367 = sbr.rel (%p365) target = $region44
        $region43: #{tpu_custom_call.1} parent=11 // pred_region
          _
        $region44: #{tpu_custom_call.1} parent=11 // pred_fallthru
          _
        // Predicated region
        $region45: #{tpu_custom_call.1} parent=11 // pred_check
          %p368 = pneg %p240
        $region46: #{tpu_custom_call.1} parent=11 // pred_check_branch
          %370 = sbr.rel (%p368) target = $region48
        $region47: #{tpu_custom_call.1} parent=11 // pred_region
          _
        $region48: #{tpu_custom_call.1} parent=11 // pred_fallthru
          _
        // Predicated region
        $region49: #{tpu_custom_call.1} parent=11 // pred_check
          %p371 = pneg %p261
        $region50: #{tpu_custom_call.1} parent=11 // pred_check_branch
          %373 = sbr.rel (%p371) target = $region52
        $region51: #{tpu_custom_call.1} parent=11 // pred_region
          _
        $region52: #{tpu_custom_call.1} parent=11 // pred_fallthru
          _
        // Predicated region
        $region53: #{tpu_custom_call.1} parent=11 // pred_check
          %p374 = pneg %p282
        $region54: #{tpu_custom_call.1} parent=11 // pred_check_branch
          %376 = sbr.rel (%p374) target = $region56
        $region55: #{tpu_custom_call.1} parent=11 // pred_region
          _
        $region56: #{tpu_custom_call.1} parent=11 // pred_fallthru
          _
        // Predicated region
        $region57: #{tpu_custom_call.1} parent=11 // pred_check
          %p377 = pneg %p303
        $region58: #{tpu_custom_call.1} parent=11 // pred_check_branch
          %379 = sbr.rel (%p377) target = $region60
        $region59: #{tpu_custom_call.1} parent=11 // pred_region
          _
        $region60: #{tpu_custom_call.1} parent=11 // pred_fallthru
          _
      $region12: #{tpu_custom_call.1} parent=5 // pred_fallthru
        _
      %p380 = scmp.lt.s32.totalorder %s25, 2
      // Predicated region
      $region61: #{tpu_custom_call.1} parent=5 // pred_check
        %p381 = pneg %p380
      $region62: #{tpu_custom_call.1} parent=5 // pred_check_branch
        %383 = sbr.rel (%p381) target = $region64
      $region63: #{tpu_custom_call.1} parent=5 // pred_region
        // Predicated region
        $region65: #{tpu_custom_call.1} parent=63 // pred_check
          %p384 = pneg %p45
        $region66: #{tpu_custom_call.1} parent=63 // pred_check_branch
          %386 = sbr.rel (%p384) target = $region68
        $region67: #{tpu_custom_call.1} parent=63 // pred_region
          %s387 = sand.u32 %s35, 1
          %s388 = scalar_lea.sflag [#allocation3], %s387
          %s389 = sand.u32 %s35, 1
          %s390 = smul.addr %s389, 504
          %s391 = scalar_lea.vmem [#allocation2], %s390
          %s392 = smul.u32 63, %s25
          %s393 = ssub.s32 125, %s392
          %p394 = scmp.lt.s32.totalorder %s393, 63
          %s395 = scalar_select %p394, %s393, 63
          %s396 = smul.u32 8, %s395
          %s397 = ssub.s32 504, %s396
          %s398 = sshll.u32 %s397, 4
          %399 = vsyncadd %s388, %s398
          %p400 = scmp.ne.s32.totalorder 0, %s396
          %s401 = smul.addr %s392, 8
          %s402 = scalar_lea.hbm %s0, %s401
          %s403 = smul.u32 8, %s395
          %s404 = sshll.u32 %s402, 4
          %s405 = int_to_ptr.hbm [resolvable:$true] %s404
          %s406 = sshll.u32 %s391, 4
          %s407 = int_to_ptr.vmem [resolvable:$true] %s406
          %s408 = sshll.u32 %s403, 4
          %412 = dma.hbm_to_vmem [thread:$0]  (%p400), %s405, %s408, %s407, %s388, 128, 128, 8
        $region68: #{tpu_custom_call.1} parent=63 // pred_fallthru
          _
      $region64: #{tpu_custom_call.1} parent=5 // pred_fallthru
        _
      %p413 = scmp.le.s32.totalorder 1, %s25
      %p414 = scmp.lt.s32.totalorder %s25, 3
      %p415 = pnand %p413, %p414
      %p416 = pneg %p415
      // Predicated region
      $region69: #{tpu_custom_call.1} parent=5 // pred_check
        _
      $region70: #{tpu_custom_call.1} parent=5 // pred_check_branch
        %418 = sbr.rel (%p415) target = $region72
      $region71: #{tpu_custom_call.1} parent=5 // pred_region
        %s419 = ssub.s32 %s25, 1
        %s420 = sand.u32 %s38, 1
        %s421 = scalar_lea.sflag [#allocation3], %s420
        %s422 = sand.u32 %s38, 1
        %s423 = smul.addr %s422, 504
        %s424 = scalar_lea.vmem [#allocation2], %s423
        // Predicated region
        $region73: #{tpu_custom_call.1} parent=71 // pred_check
          %p425 = pneg %p51
        $region74: #{tpu_custom_call.1} parent=71 // pred_check_branch
          %427 = sbr.rel (%p425) target = $region76
        $region75: #{tpu_custom_call.1} parent=71 // pred_region
          %429 = dma.done %s421, 8064
        $region76: #{tpu_custom_call.1} parent=71 // pred_fallthru
          _
        %s430 = sand.u32 %s38, 1
        %s431 = scalar_lea.sflag [#allocation3], %s430
        %s432 = sand.u32 %s38, 1
        %s433 = smul.addr %s432, 504
        %s434 = scalar_lea.vmem [#allocation2], %s433
        %p435 = pneg %p51
        %p436 = pneg %p48
        %p437 = pneg %p72
        %p438 = pneg %p69
        %p439 = pneg %p93
        %p440 = pneg %p90
        %p441 = pneg %p114
        %p442 = pneg %p111
        %p443 = pneg %p135
        %p444 = pneg %p132
        %p445 = pneg %p156
        %p446 = pneg %p153
        %p447 = pneg %p177
        %p448 = pneg %p174
        %p449 = pneg %p198
        %p450 = pneg %p195
        %p451 = pneg %p219
        %p452 = pneg %p216
        %p453 = pneg %p240
        %p454 = pneg %p237
        %p455 = pneg %p261
        %p456 = pneg %p258
        %p457 = pneg %p282
        %p458 = pneg %p279
        %p459 = pneg %p303
        %p460 = pneg %p300
        %p461 = pneg %p329
        %p462 = pneg %p326
        %s463 = sand.u32 %s316, 1
        %s464 = scalar_lea.sflag [#allocation4], %s463
        %s465 = sand.u32 %s316, 1
        %s466 = smul.addr %s465, 504
        %s467 = scalar_lea.vmem [#allocation5], %s466
        %s468 = smul.u32 63, %s30
        %s469 = ssub.s32 125, %s468
        %p470 = scmp.lt.s32.totalorder %s469, 63
        %s471 = scalar_select %p470, %s469, 63
        %s472 = smul.u32 8, %s471
        %s473 = smul.u32 63, %s30
        %s474 = ssub.s32 125, %s473
        %p475 = scmp.lt.s32.totalorder %s474, 63
        %s476 = scalar_select %p475, %s474, 63
        %s477 = smul.u32 8, %s476
        %v479 = vld [vmem:[%s424] sm:$0xff]
        %v480 = vld [vmem:[%s424 + $0x8] sm:$0xff]
        %v481 = vld [vmem:[%s424 + $0x10] sm:$0xff]
        %v482 = vld [vmem:[%s424 + $0x18] sm:$0xff]
        %v483 = vld [vmem:[%s424 + $0x20] sm:$0xff]
        %v484 = vld [vmem:[%s424 + $0x28] sm:$0xff]
        %v485 = vld [vmem:[%s424 + $0x30] sm:$0xff]
        %v486 = vld [vmem:[%s424 + $0x38] sm:$0xff]
        %v487 = vld [vmem:[%s424 + $0x40] sm:$0xff]
        %v488 = vld [vmem:[%s424 + $0x48] sm:$0xff]
        %v489 = vld [vmem:[%s424 + $0x50] sm:$0xff]
        %v490 = vld [vmem:[%s424 + $0x58] sm:$0xff]
        %v491 = vld [vmem:[%s424 + $0x60] sm:$0xff]
        %v492 = vld [vmem:[%s424 + $0x68] sm:$0xff]
        %v493 = vld [vmem:[%s424 + $0x70] sm:$0xff]
        %v494 = vld [vmem:[%s424 + $0x78] sm:$0xff]
        %v495 = vld [vmem:[%s424 + $0x80] sm:$0xff]
        %v496 = vld [vmem:[%s424 + $0x88] sm:$0xff]
        %v497 = vld [vmem:[%s424 + $0x90] sm:$0xff]
        %v498 = vld [vmem:[%s424 + $0x98] sm:$0xff]
        %v499 = vld [vmem:[%s424 + $0xa0] sm:$0xff]
        %v500 = vld [vmem:[%s424 + $0xa8] sm:$0xff]
        %v501 = vld [vmem:[%s424 + $0xb0] sm:$0xff]
        %v502 = vld [vmem:[%s424 + $0xb8] sm:$0xff]
        %v503 = vld [vmem:[%s424 + $0xc0] sm:$0xff]
        %v504 = vld [vmem:[%s424 + $0xc8] sm:$0xff]
        %v505 = vld [vmem:[%s424 + $0xd0] sm:$0xff]
        %v506 = vld [vmem:[%s424 + $0xd8] sm:$0xff]
        %v507 = vld [vmem:[%s424 + $0xe0] sm:$0xff]
        %v508 = vld [vmem:[%s424 + $0xe8] sm:$0xff]
        %v509 = vld [vmem:[%s424 + $0xf0] sm:$0xff]
        %v510 = vld [vmem:[%s424 + $0xf8] sm:$0xff]
        %v511 = vld [vmem:[%s424 + $0x100] sm:$0xff]
        %v512 = vld [vmem:[%s424 + $0x108] sm:$0xff]
        %v513 = vld [vmem:[%s424 + $0x110] sm:$0xff]
        %v514 = vld [vmem:[%s424 + $0x118] sm:$0xff]
        %v515 = vld [vmem:[%s424 + $0x120] sm:$0xff]
        %v516 = vld [vmem:[%s424 + $0x128] sm:$0xff]
        %v517 = vld [vmem:[%s424 + $0x130] sm:$0xff]
        %v518 = vld [vmem:[%s424 + $0x138] sm:$0xff]
        %v519 = vld [vmem:[%s424 + $0x140] sm:$0xff]
        %v520 = vld [vmem:[%s424 + $0x148] sm:$0xff]
        %v521 = vld [vmem:[%s424 + $0x150] sm:$0xff]
        %v522 = vld [vmem:[%s424 + $0x158] sm:$0xff]
        %v523 = vld [vmem:[%s424 + $0x160] sm:$0xff]
        %v524 = vld [vmem:[%s424 + $0x168] sm:$0xff]
        %v525 = vld [vmem:[%s424 + $0x170] sm:$0xff]
        %v526 = vld [vmem:[%s424 + $0x178] sm:$0xff]
        %v527 = vld [vmem:[%s424 + $0x180] sm:$0xff]
        %v528 = vld [vmem:[%s424 + $0x188] sm:$0xff]
        %v529 = vld [vmem:[%s424 + $0x190] sm:$0xff]
        %v530 = vld [vmem:[%s424 + $0x198] sm:$0xff]
        %v531 = vld [vmem:[%s424 + $0x1a0] sm:$0xff]
        %v532 = vld [vmem:[%s424 + $0x1a8] sm:$0xff]
        %v533 = vld [vmem:[%s424 + $0x1b0] sm:$0xff]
        %v534 = vld [vmem:[%s424 + $0x1b8] sm:$0xff]
        %v535 = vld [vmem:[%s424 + $0x1c0] sm:$0xff]
        %v536 = vld [vmem:[%s424 + $0x1c8] sm:$0xff]
        %v537 = vld [vmem:[%s424 + $0x1d0] sm:$0xff]
        %v538 = vld [vmem:[%s424 + $0x1d8] sm:$0xff]
        %v539 = vld [vmem:[%s424 + $0x1e0] sm:$0xff]
        %v540 = vld [vmem:[%s424 + $0x1e8] sm:$0xff]
        %v541 = vld [vmem:[%s424 + $0x1f0] sm:$0xff]
        %v542 = vpack.c.bf16 %v480, %v479
        %v543 = vpack.c.bf16 %v482, %v481
        %v544 = vpack.c.bf16 %v484, %v483
        %v545 = vpack.c.bf16 %v486, %v485
        %v546 = vpack.c.bf16 %v488, %v487
        %v547 = vpack.c.bf16 %v490, %v489
        %v548 = vpack.c.bf16 %v492, %v491
        %v549 = vpack.c.bf16 %v494, %v493
        %v550 = vpack.c.bf16 %v496, %v495
        %v551 = vpack.c.bf16 %v498, %v497
        %v552 = vpack.c.bf16 %v500, %v499
        %v553 = vpack.c.bf16 %v502, %v501
        %v554 = vpack.c.bf16 %v504, %v503
        %v555 = vpack.c.bf16 %v506, %v505
        %v556 = vpack.c.bf16 %v508, %v507
        %v557 = vpack.c.bf16 %v510, %v509
        %v558 = vpack.c.bf16 %v512, %v511
        %v559 = vpack.c.bf16 %v514, %v513
        %v560 = vpack.c.bf16 %v516, %v515
        %v561 = vpack.c.bf16 %v518, %v517
        %v562 = vpack.c.bf16 %v520, %v519
        %v563 = vpack.c.bf16 %v522, %v521
        %v564 = vpack.c.bf16 %v524, %v523
        %v565 = vpack.c.bf16 %v526, %v525
        %v566 = vpack.c.bf16 %v528, %v527
        %v567 = vpack.c.bf16 %v530, %v529
        %v568 = vpack.c.bf16 %v532, %v531
        %v569 = vpack.c.bf16 %v534, %v533
        %v570 = vpack.c.bf16 %v536, %v535
        %v571 = vpack.c.bf16 %v538, %v537
        %v572 = vpack.c.bf16 %v540, %v539
        %v573 = vpack.c.bf16 %v541, %v541
        %v574 = vld [vmem:[%s1] sm:$0xf]
        %v575 = vld [vmem:[%s1 + $0x4] sm:$0xf]
        %v576 = vld [vmem:[%s1 + $0x8] sm:$0xf]
        %v577 = vld [vmem:[%s1 + $0xc] sm:$0xf]
        %v578 = vld [vmem:[%s1 + $0x10] sm:$0xf]
        %v579 = vld [vmem:[%s1 + $0x14] sm:$0xf]
        %v580 = vld [vmem:[%s1 + $0x18] sm:$0xf]
        %v581 = vld [vmem:[%s1 + $0x1c] sm:$0xf]
        %v582 = vld [vmem:[%s1 + $0x20] sm:$0xf]
        %v583 = vld [vmem:[%s1 + $0x24] sm:$0xf]
        %v584 = vld [vmem:[%s1 + $0x28] sm:$0xf]
        %v585 = vld [vmem:[%s1 + $0x2c] sm:$0xf]
        %v586 = vld [vmem:[%s1 + $0x30] sm:$0xf]
        %v587 = vld [vmem:[%s1 + $0x34] sm:$0xf]
        %v588 = vld [vmem:[%s1 + $0x38] sm:$0xf]
        %v589 = vld [vmem:[%s1 + $0x3c] sm:$0xf]
        %v590 = vld [vmem:[%s2] sm:$0x1]
        %v592 = vperm.slane %v590, 0
        %v610 = vunpack.c.l.b16 %v574
        %v611 = vunpack.c.l.b16 %v575
        %v612 = vunpack.c.l.b16 %v576
        %v613 = vunpack.c.l.b16 %v577
        %v614 = vunpack.c.l.b16 %v578
        %v615 = vunpack.c.l.b16 %v579
        %v616 = vunpack.c.l.b16 %v580
        %v617 = vunpack.c.l.b16 %v581
        %v618 = vunpack.c.l.b16 %v582
        %v619 = vunpack.c.l.b16 %v583
        %v620 = vunpack.c.l.b16 %v584
        %v621 = vunpack.c.l.b16 %v585
        %v622 = vunpack.c.l.b16 %v586
        %v623 = vunpack.c.l.b16 %v587
        %v624 = vunpack.c.l.b16 %v588
        %v625 = vunpack.c.l.b16 %v589
        %v626 = vpack.c.b16 %v611, %v610
        %v627 = vpack.c.b16 %v613, %v612
        %v628 = vpack.c.b16 %v615, %v614
        %v629 = vpack.c.b16 %v617, %v616
        %v630 = vpack.c.b16 %v619, %v618
        %v631 = vpack.c.b16 %v621, %v620
        %v632 = vpack.c.b16 %v623, %v622
        %v633 = vpack.c.b16 %v625, %v624
        %642 = vmatpush.bf16.msra.mxu0 %v633
        %643 = vmatpush.bf16.msra.mxu0 %v632
        %644 = vmatpush.bf16.msra.mxu0 %v631
        %645 = vmatpush.bf16.msra.mxu0 %v630
        %646 = vmatpush.bf16.msra.mxu0 %v629
        %647 = vmatpush.bf16.msra.mxu0 %v628
        %648 = vmatpush.bf16.msra.mxu0 %v627
        %649 = vmatpush.bf16.msra.mxu0 %v626
        %650 = vmatmul.bf16.gmra.mxu0 %v542
        %v651 = vpop.f32.mrf.mxu0
        %v652 = vadd.f32 %v592, %v651
        %v653 = vpop.f32.mrf.mxu0
        %v654 = vadd.f32 %v592, %v653
        %655 = vmatmul.bf16.gmra.mxu0 %v543
        %v656 = vpop.f32.mrf.mxu0
        %v657 = vadd.f32 %v592, %v656
        %v658 = vpop.f32.mrf.mxu0
        %v659 = vadd.f32 %v592, %v658
        %660 = vmatmul.bf16.gmra.mxu0 %v544
        %v661 = vpop.f32.mrf.mxu0
        %v662 = vadd.f32 %v592, %v661
        %v663 = vpop.f32.mrf.mxu0
        %v664 = vadd.f32 %v592, %v663
        %665 = vmatmul.bf16.gmra.mxu0 %v545
        %v666 = vpop.f32.mrf.mxu0
        %v667 = vadd.f32 %v592, %v666
        %v668 = vpop.f32.mrf.mxu0
        %v669 = vadd.f32 %v592, %v668
        %670 = vmatmul.bf16.gmra.mxu0 %v546
        %v671 = vpop.f32.mrf.mxu0
        %v672 = vadd.f32 %v592, %v671
        %v673 = vpop.f32.mrf.mxu0
        %v674 = vadd.f32 %v592, %v673
        %675 = vmatmul.bf16.gmra.mxu0 %v547
        %v676 = vpop.f32.mrf.mxu0
        %v677 = vadd.f32 %v592, %v676
        %v678 = vpop.f32.mrf.mxu0
        %v679 = vadd.f32 %v592, %v678
        %680 = vmatmul.bf16.gmra.mxu0 %v548
        %v681 = vpop.f32.mrf.mxu0
        %v682 = vadd.f32 %v592, %v681
        %v683 = vpop.f32.mrf.mxu0
        %v684 = vadd.f32 %v592, %v683
        %685 = vmatmul.bf16.gmra.mxu0 %v549
        %v686 = vpop.f32.mrf.mxu0
        %v687 = vadd.f32 %v592, %v686
        %v688 = vpop.f32.mrf.mxu0
        %v689 = vadd.f32 %v592, %v688
        %690 = vmatmul.bf16.gmra.mxu0 %v550
        %v691 = vpop.f32.mrf.mxu0
        %v692 = vadd.f32 %v592, %v691
        %v693 = vpop.f32.mrf.mxu0
        %v694 = vadd.f32 %v592, %v693
        %695 = vmatmul.bf16.gmra.mxu0 %v551
        %v696 = vpop.f32.mrf.mxu0
        %v697 = vadd.f32 %v592, %v696
        %v698 = vpop.f32.mrf.mxu0
        %v699 = vadd.f32 %v592, %v698
        %700 = vmatmul.bf16.gmra.mxu0 %v552
        %v701 = vpop.f32.mrf.mxu0
        %v702 = vadd.f32 %v592, %v701
        %v703 = vpop.f32.mrf.mxu0
        %v704 = vadd.f32 %v592, %v703
        %705 = vmatmul.bf16.gmra.mxu0 %v553
        %v706 = vpop.f32.mrf.mxu0
        %v707 = vadd.f32 %v592, %v706
        %v708 = vpop.f32.mrf.mxu0
        %v709 = vadd.f32 %v592, %v708
        %710 = vmatmul.bf16.gmra.mxu0 %v554
        %v711 = vpop.f32.mrf.mxu0
        %v712 = vadd.f32 %v592, %v711
        %v713 = vpop.f32.mrf.mxu0
        %v714 = vadd.f32 %v592, %v713
        %715 = vmatmul.bf16.gmra.mxu0 %v555
        %v716 = vpop.f32.mrf.mxu0
        %v717 = vadd.f32 %v592, %v716
        %v718 = vpop.f32.mrf.mxu0
        %v719 = vadd.f32 %v592, %v718
        %720 = vmatmul.bf16.gmra.mxu0 %v556
        %v721 = vpop.f32.mrf.mxu0
        %v722 = vadd.f32 %v592, %v721
        %v723 = vpop.f32.mrf.mxu0
        %v724 = vadd.f32 %v592, %v723
        %725 = vmatmul.bf16.gmra.mxu0 %v557
        %v726 = vpop.f32.mrf.mxu0
        %v727 = vadd.f32 %v592, %v726
        %v728 = vpop.f32.mrf.mxu0
        %v729 = vadd.f32 %v592, %v728
        %730 = vmatmul.bf16.gmra.mxu0 %v558
        %v731 = vpop.f32.mrf.mxu0
        %v732 = vadd.f32 %v592, %v731
        %v733 = vpop.f32.mrf.mxu0
        %v734 = vadd.f32 %v592, %v733
        %735 = vmatmul.bf16.gmra.mxu0 %v559
        %v736 = vpop.f32.mrf.mxu0
        %v737 = vadd.f32 %v592, %v736
        %v738 = vpop.f32.mrf.mxu0
        %v739 = vadd.f32 %v592, %v738
        %740 = vmatmul.bf16.gmra.mxu0 %v560
        %v741 = vpop.f32.mrf.mxu0
        %v742 = vadd.f32 %v592, %v741
        %v743 = vpop.f32.mrf.mxu0
        %v744 = vadd.f32 %v592, %v743
        %745 = vmatmul.bf16.gmra.mxu0 %v561
        %v746 = vpop.f32.mrf.mxu0
        %v747 = vadd.f32 %v592, %v746
        %v748 = vpop.f32.mrf.mxu0
        %v749 = vadd.f32 %v592, %v748
        %750 = vmatmul.bf16.gmra.mxu0 %v562
        %v751 = vpop.f32.mrf.mxu0
        %v752 = vadd.f32 %v592, %v751
        %v753 = vpop.f32.mrf.mxu0
        %v754 = vadd.f32 %v592, %v753
        %755 = vmatmul.bf16.gmra.mxu0 %v563
        %v756 = vpop.f32.mrf.mxu0
        %v757 = vadd.f32 %v592, %v756
        %v758 = vpop.f32.mrf.mxu0
        %v759 = vadd.f32 %v592, %v758
        %760 = vmatmul.bf16.gmra.mxu0 %v564
        %v761 = vpop.f32.mrf.mxu0
        %v762 = vadd.f32 %v592, %v761
        %v763 = vpop.f32.mrf.mxu0
        %v764 = vadd.f32 %v592, %v763
        %765 = vmatmul.bf16.gmra.mxu0 %v565
        %v766 = vpop.f32.mrf.mxu0
        %v767 = vadd.f32 %v592, %v766
        %v768 = vpop.f32.mrf.mxu0
        %v769 = vadd.f32 %v592, %v768
        %770 = vmatmul.bf16.gmra.mxu0 %v566
        %v771 = vpop.f32.mrf.mxu0
        %v772 = vadd.f32 %v592, %v771
        %v773 = vpop.f32.mrf.mxu0
        %v774 = vadd.f32 %v592, %v773
        %775 = vmatmul.bf16.gmra.mxu0 %v567
        %v776 = vpop.f32.mrf.mxu0
        %v777 = vadd.f32 %v592, %v776
        %v778 = vpop.f32.mrf.mxu0
        %v779 = vadd.f32 %v592, %v778
        %780 = vmatmul.bf16.gmra.mxu0 %v568
        %v781 = vpop.f32.mrf.mxu0
        %v782 = vadd.f32 %v592, %v781
        %v783 = vpop.f32.mrf.mxu0
        %v784 = vadd.f32 %v592, %v783
        %785 = vmatmul.bf16.gmra.mxu0 %v569
        %v786 = vpop.f32.mrf.mxu0
        %v787 = vadd.f32 %v592, %v786
        %v788 = vpop.f32.mrf.mxu0
        %v789 = vadd.f32 %v592, %v788
        %790 = vmatmul.bf16.gmra.mxu0 %v570
        %v791 = vpop.f32.mrf.mxu0
        %v792 = vadd.f32 %v592, %v791
        %v793 = vpop.f32.mrf.mxu0
        %v794 = vadd.f32 %v592, %v793
        %795 = vmatmul.bf16.gmra.mxu0 %v571
        %v796 = vpop.f32.mrf.mxu0
        %v797 = vadd.f32 %v592, %v796
        %v798 = vpop.f32.mrf.mxu0
        %v799 = vadd.f32 %v592, %v798
        %800 = vmatmul.bf16.gmra.mxu0 %v572
        %v801 = vpop.f32.mrf.mxu0
        %v802 = vadd.f32 %v592, %v801
        %v803 = vpop.f32.mrf.mxu0
        %v804 = vadd.f32 %v592, %v803
        %805 = vmatmul.bf16.gmra.mxu0 %v573
        %v806 = vpop.f32.mrf.mxu0
        %v807 = vadd.f32 %v592, %v806
        %v808 = vpop.f32.mrf.mxu0
        %809 = vdwg.mxu0
        %v810 = vmax.f32 %v652, 0.0
        %v811 = vmax.f32 %v654, 0.0
        %v812 = vmax.f32 %v657, 0.0
        %v813 = vmax.f32 %v659, 0.0
        %v814 = vmax.f32 %v662, 0.0
        %v815 = vmax.f32 %v664, 0.0
        %v816 = vmax.f32 %v667, 0.0
        %v817 = vmax.f32 %v669, 0.0
        %v818 = vmax.f32 %v672, 0.0
        %v819 = vmax.f32 %v674, 0.0
        %v820 = vmax.f32 %v677, 0.0
        %v821 = vmax.f32 %v679, 0.0
        %v822 = vmax.f32 %v682, 0.0
        %v823 = vmax.f32 %v684, 0.0
        %v824 = vmax.f32 %v687, 0.0
        %v825 = vmax.f32 %v689, 0.0
        %v826 = vmax.f32 %v692, 0.0
        %v827 = vmax.f32 %v694, 0.0
        %v828 = vmax.f32 %v697, 0.0
        %v829 = vmax.f32 %v699, 0.0
        %v830 = vmax.f32 %v702, 0.0
        %v831 = vmax.f32 %v704, 0.0
        %v832 = vmax.f32 %v707, 0.0
        %v833 = vmax.f32 %v709, 0.0
        %v834 = vmax.f32 %v712, 0.0
        %v835 = vmax.f32 %v714, 0.0
        %v836 = vmax.f32 %v717, 0.0
        %v837 = vmax.f32 %v719, 0.0
        %v838 = vmax.f32 %v722, 0.0
        %v839 = vmax.f32 %v724, 0.0
        %v840 = vmax.f32 %v727, 0.0
        %v841 = vmax.f32 %v729, 0.0
        %v842 = vmax.f32 %v732, 0.0
        %v843 = vmax.f32 %v734, 0.0
        %v844 = vmax.f32 %v737, 0.0
        %v845 = vmax.f32 %v739, 0.0
        %v846 = vmax.f32 %v742, 0.0
        %v847 = vmax.f32 %v744, 0.0
        %v848 = vmax.f32 %v747, 0.0
        %v849 = vmax.f32 %v749, 0.0
        %v850 = vmax.f32 %v752, 0.0
        %v851 = vmax.f32 %v754, 0.0
        %v852 = vmax.f32 %v757, 0.0
        %v853 = vmax.f32 %v759, 0.0
        %v854 = vmax.f32 %v762, 0.0
        %v855 = vmax.f32 %v764, 0.0
        %v856 = vmax.f32 %v767, 0.0
        %v857 = vmax.f32 %v769, 0.0
        %v858 = vmax.f32 %v772, 0.0
        %v859 = vmax.f32 %v774, 0.0
        %v860 = vmax.f32 %v777, 0.0
        %v861 = vmax.f32 %v779, 0.0
        %v862 = vmax.f32 %v782, 0.0
        %v863 = vmax.f32 %v784, 0.0
        %v864 = vmax.f32 %v787, 0.0
        %v865 = vmax.f32 %v789, 0.0
        %v866 = vmax.f32 %v792, 0.0
        %v867 = vmax.f32 %v794, 0.0
        %v868 = vmax.f32 %v797, 0.0
        %v869 = vmax.f32 %v799, 0.0
        %v870 = vmax.f32 %v802, 0.0
        %v871 = vmax.f32 %v804, 0.0
        %v872 = vmax.f32 %v807, 0.0
        %v873 = vpack.c.bf16 %v811, %v810
        %v874 = vpack.c.bf16 %v813, %v812
        %v875 = vpack.c.bf16 %v815, %v814
        %v876 = vpack.c.bf16 %v817, %v816
        %v877 = vpack.c.bf16 %v819, %v818
        %v878 = vpack.c.bf16 %v821, %v820
        %v879 = vpack.c.bf16 %v823, %v822
        %v880 = vpack.c.bf16 %v825, %v824
        %v881 = vpack.c.bf16 %v827, %v826
        %v882 = vpack.c.bf16 %v829, %v828
        %v883 = vpack.c.bf16 %v831, %v830
        %v884 = vpack.c.bf16 %v833, %v832
        %v885 = vpack.c.bf16 %v835, %v834
        %v886 = vpack.c.bf16 %v837, %v836
        %v887 = vpack.c.bf16 %v839, %v838
        %v888 = vpack.c.bf16 %v841, %v840
        %v889 = vpack.c.bf16 %v843, %v842
        %v890 = vpack.c.bf16 %v845, %v844
        %v891 = vpack.c.bf16 %v847, %v846
        %v892 = vpack.c.bf16 %v849, %v848
        %v893 = vpack.c.bf16 %v851, %v850
        %v894 = vpack.c.bf16 %v853, %v852
        %v895 = vpack.c.bf16 %v855, %v854
        %v896 = vpack.c.bf16 %v857, %v856
        %v897 = vpack.c.bf16 %v859, %v858
        %v898 = vpack.c.bf16 %v861, %v860
        %v899 = vpack.c.bf16 %v863, %v862
        %v900 = vpack.c.bf16 %v865, %v864
        %v901 = vpack.c.bf16 %v867, %v866
        %v902 = vpack.c.bf16 %v869, %v868
        %v903 = vpack.c.bf16 %v871, %v870
        %v904 = vpack.c.bf16 %v872, %v872
        %v905 = vld [vmem:[%s3] sm:$0xf]
        %v906 = vld [vmem:[%s3 + $0x4] sm:$0xf]
        %v907 = vld [vmem:[%s3 + $0x8] sm:$0xf]
        %v908 = vld [vmem:[%s3 + $0xc] sm:$0xf]
        %v909 = vld [vmem:[%s3 + $0x10] sm:$0xf]
        %v910 = vld [vmem:[%s3 + $0x14] sm:$0xf]
        %v911 = vld [vmem:[%s3 + $0x18] sm:$0xf]
        %v912 = vld [vmem:[%s3 + $0x1c] sm:$0xf]
        %v913 = vld [vmem:[%s4] sm:$0x1]
        %v915 = vperm.slane %v913, 0
        %v925 = vunpack.c.l.b16 %v905
        %v926 = vunpack.c.l.b16 %v906
        %v927 = vunpack.c.l.b16 %v907
        %v928 = vunpack.c.l.b16 %v908
        %v929 = vunpack.c.l.b16 %v909
        %v930 = vunpack.c.l.b16 %v910
        %v931 = vunpack.c.l.b16 %v911
        %v932 = vunpack.c.l.b16 %v912
        %v933 = vpack.c.b16 %v926, %v925
        %v934 = vpack.c.b16 %v928, %v927
        %v935 = vpack.c.b16 %v930, %v929
        %v936 = vpack.c.b16 %v932, %v931
        %vm941 = vcmask 523264
        %v943 = vsel %vm941, %v873, 0
        %v946 = vsel %vm941, %v874, 0
        %v949 = vsel %vm941, %v875, 0
        %v952 = vsel %vm941, %v876, 0
        %v955 = vsel %vm941, %v877, 0
        %v958 = vsel %vm941, %v878, 0
        %v961 = vsel %vm941, %v879, 0
        %v964 = vsel %vm941, %v880, 0
        %v967 = vsel %vm941, %v881, 0
        %v970 = vsel %vm941, %v882, 0
        %v973 = vsel %vm941, %v883, 0
        %v976 = vsel %vm941, %v884, 0
        %v979 = vsel %vm941, %v885, 0
        %v982 = vsel %vm941, %v886, 0
        %v985 = vsel %vm941, %v887, 0
        %v988 = vsel %vm941, %v888, 0
        %v991 = vsel %vm941, %v889, 0
        %v994 = vsel %vm941, %v890, 0
        %v997 = vsel %vm941, %v891, 0
        %v1000 = vsel %vm941, %v892, 0
        %v1003 = vsel %vm941, %v893, 0
        %v1006 = vsel %vm941, %v894, 0
        %v1009 = vsel %vm941, %v895, 0
        %v1012 = vsel %vm941, %v896, 0
        %v1015 = vsel %vm941, %v897, 0
        %v1018 = vsel %vm941, %v898, 0
        %v1021 = vsel %vm941, %v899, 0
        %v1024 = vsel %vm941, %v900, 0
        %v1027 = vsel %vm941, %v901, 0
        %v1030 = vsel %vm941, %v902, 0
        %v1033 = vsel %vm941, %v903, 0
        %v1036 = vsel %vm941, %v904, 0
        %1038 = vmatpush.bf16.msra.mxu0 0
        %1039 = vmatpush.bf16.msra.mxu0 0
        %1040 = vmatpush.bf16.msra.mxu0 0
        %1041 = vmatpush.bf16.msra.mxu0 0
        %1042 = vmatpush.bf16.msra.mxu0 %v936
        %1043 = vmatpush.bf16.msra.mxu0 %v935
        %1044 = vmatpush.bf16.msra.mxu0 %v934
        %1045 = vmatpush.bf16.msra.mxu0 %v933
        %1046 = vmatmul.bf16.gmra.mxu0 %v943
        %v1047 = vpop.f32.mrf.mxu0
        %v1048 = vadd.f32 %v915, %v1047
        %v1049 = vpop.f32.mrf.mxu0
        %v1050 = vadd.f32 %v915, %v1049
        %1051 = vmatmul.bf16.gmra.mxu0 %v946
        %v1052 = vpop.f32.mrf.mxu0
        %v1053 = vadd.f32 %v915, %v1052
        %v1054 = vpop.f32.mrf.mxu0
        %v1055 = vadd.f32 %v915, %v1054
        %1056 = vmatmul.bf16.gmra.mxu0 %v949
        %v1057 = vpop.f32.mrf.mxu0
        %v1058 = vadd.f32 %v915, %v1057
        %v1059 = vpop.f32.mrf.mxu0
        %v1060 = vadd.f32 %v915, %v1059
        %1061 = vmatmul.bf16.gmra.mxu0 %v952
        %v1062 = vpop.f32.mrf.mxu0
        %v1063 = vadd.f32 %v915, %v1062
        %v1064 = vpop.f32.mrf.mxu0
        %v1065 = vadd.f32 %v915, %v1064
        %1066 = vmatmul.bf16.gmra.mxu0 %v955
        %v1067 = vpop.f32.mrf.mxu0
        %v1068 = vadd.f32 %v915, %v1067
        %v1069 = vpop.f32.mrf.mxu0
        %v1070 = vadd.f32 %v915, %v1069
        %1071 = vmatmul.bf16.gmra.mxu0 %v958
        %v1072 = vpop.f32.mrf.mxu0
        %v1073 = vadd.f32 %v915, %v1072
        %v1074 = vpop.f32.mrf.mxu0
        %v1075 = vadd.f32 %v915, %v1074
        %1076 = vmatmul.bf16.gmra.mxu0 %v961
        %v1077 = vpop.f32.mrf.mxu0
        %v1078 = vadd.f32 %v915, %v1077
        %v1079 = vpop.f32.mrf.mxu0
        %v1080 = vadd.f32 %v915, %v1079
        %1081 = vmatmul.bf16.gmra.mxu0 %v964
        %v1082 = vpop.f32.mrf.mxu0
        %v1083 = vadd.f32 %v915, %v1082
        %v1084 = vpop.f32.mrf.mxu0
        %v1085 = vadd.f32 %v915, %v1084
        %1086 = vmatmul.bf16.gmra.mxu0 %v967
        %v1087 = vpop.f32.mrf.mxu0
        %v1088 = vadd.f32 %v915, %v1087
        %v1089 = vpop.f32.mrf.mxu0
        %v1090 = vadd.f32 %v915, %v1089
        %1091 = vmatmul.bf16.gmra.mxu0 %v970
        %v1092 = vpop.f32.mrf.mxu0
        %v1093 = vadd.f32 %v915, %v1092
        %v1094 = vpop.f32.mrf.mxu0
        %v1095 = vadd.f32 %v915, %v1094
        %1096 = vmatmul.bf16.gmra.mxu0 %v973
        %v1097 = vpop.f32.mrf.mxu0
        %v1098 = vadd.f32 %v915, %v1097
        %v1099 = vpop.f32.mrf.mxu0
        %v1100 = vadd.f32 %v915, %v1099
        %1101 = vmatmul.bf16.gmra.mxu0 %v976
        %v1102 = vpop.f32.mrf.mxu0
        %v1103 = vadd.f32 %v915, %v1102
        %v1104 = vpop.f32.mrf.mxu0
        %v1105 = vadd.f32 %v915, %v1104
        %1106 = vmatmul.bf16.gmra.mxu0 %v979
        %v1107 = vpop.f32.mrf.mxu0
        %v1108 = vadd.f32 %v915, %v1107
        %v1109 = vpop.f32.mrf.mxu0
        %v1110 = vadd.f32 %v915, %v1109
        %1111 = vmatmul.bf16.gmra.mxu0 %v982
        %v1112 = vpop.f32.mrf.mxu0
        %v1113 = vadd.f32 %v915, %v1112
        %v1114 = vpop.f32.mrf.mxu0
        %v1115 = vadd.f32 %v915, %v1114
        %1116 = vmatmul.bf16.gmra.mxu0 %v985
        %v1117 = vpop.f32.mrf.mxu0
        %v1118 = vadd.f32 %v915, %v1117
        %v1119 = vpop.f32.mrf.mxu0
        %v1120 = vadd.f32 %v915, %v1119
        %1121 = vmatmul.bf16.gmra.mxu0 %v988
        %v1122 = vpop.f32.mrf.mxu0
        %v1123 = vadd.f32 %v915, %v1122
        %v1124 = vpop.f32.mrf.mxu0
        %v1125 = vadd.f32 %v915, %v1124
        %1126 = vmatmul.bf16.gmra.mxu0 %v991
        %v1127 = vpop.f32.mrf.mxu0
        %v1128 = vadd.f32 %v915, %v1127
        %v1129 = vpop.f32.mrf.mxu0
        %v1130 = vadd.f32 %v915, %v1129
        %1131 = vmatmul.bf16.gmra.mxu0 %v994
        %v1132 = vpop.f32.mrf.mxu0
        %v1133 = vadd.f32 %v915, %v1132
        %v1134 = vpop.f32.mrf.mxu0
        %v1135 = vadd.f32 %v915, %v1134
        %1136 = vmatmul.bf16.gmra.mxu0 %v997
        %v1137 = vpop.f32.mrf.mxu0
        %v1138 = vadd.f32 %v915, %v1137
        %v1139 = vpop.f32.mrf.mxu0
        %v1140 = vadd.f32 %v915, %v1139
        %1141 = vmatmul.bf16.gmra.mxu0 %v1000
        %v1142 = vpop.f32.mrf.mxu0
        %v1143 = vadd.f32 %v915, %v1142
        %v1144 = vpop.f32.mrf.mxu0
        %v1145 = vadd.f32 %v915, %v1144
        %1146 = vmatmul.bf16.gmra.mxu0 %v1003
        %v1147 = vpop.f32.mrf.mxu0
        %v1148 = vadd.f32 %v915, %v1147
        %v1149 = vpop.f32.mrf.mxu0
        %v1150 = vadd.f32 %v915, %v1149
        %1151 = vmatmul.bf16.gmra.mxu0 %v1006
        %v1152 = vpop.f32.mrf.mxu0
        %v1153 = vadd.f32 %v915, %v1152
        %v1154 = vpop.f32.mrf.mxu0
        %v1155 = vadd.f32 %v915, %v1154
        %1156 = vmatmul.bf16.gmra.mxu0 %v1009
        %v1157 = vpop.f32.mrf.mxu0
        %v1158 = vadd.f32 %v915, %v1157
        %v1159 = vpop.f32.mrf.mxu0
        %v1160 = vadd.f32 %v915, %v1159
        %1161 = vmatmul.bf16.gmra.mxu0 %v1012
        %v1162 = vpop.f32.mrf.mxu0
        %v1163 = vadd.f32 %v915, %v1162
        %v1164 = vpop.f32.mrf.mxu0
        %v1165 = vadd.f32 %v915, %v1164
        %1166 = vmatmul.bf16.gmra.mxu0 %v1015
        %v1167 = vpop.f32.mrf.mxu0
        %v1168 = vadd.f32 %v915, %v1167
        %v1169 = vpop.f32.mrf.mxu0
        %v1170 = vadd.f32 %v915, %v1169
        %1171 = vmatmul.bf16.gmra.mxu0 %v1018
        %v1172 = vpop.f32.mrf.mxu0
        %v1173 = vadd.f32 %v915, %v1172
        %v1174 = vpop.f32.mrf.mxu0
        %v1175 = vadd.f32 %v915, %v1174
        %1176 = vmatmul.bf16.gmra.mxu0 %v1021
        %v1177 = vpop.f32.mrf.mxu0
        %v1178 = vadd.f32 %v915, %v1177
        %v1179 = vpop.f32.mrf.mxu0
        %v1180 = vadd.f32 %v915, %v1179
        %1181 = vmatmul.bf16.gmra.mxu0 %v1024
        %v1182 = vpop.f32.mrf.mxu0
        %v1183 = vadd.f32 %v915, %v1182
        %v1184 = vpop.f32.mrf.mxu0
        %v1185 = vadd.f32 %v915, %v1184
        %1186 = vmatmul.bf16.gmra.mxu0 %v1027
        %v1187 = vpop.f32.mrf.mxu0
        %v1188 = vadd.f32 %v915, %v1187
        %v1189 = vpop.f32.mrf.mxu0
        %v1190 = vadd.f32 %v915, %v1189
        %1191 = vmatmul.bf16.gmra.mxu0 %v1030
        %v1192 = vpop.f32.mrf.mxu0
        %v1193 = vadd.f32 %v915, %v1192
        %v1194 = vpop.f32.mrf.mxu0
        %v1195 = vadd.f32 %v915, %v1194
        %1196 = vmatmul.bf16.gmra.mxu0 %v1033
        %v1197 = vpop.f32.mrf.mxu0
        %v1198 = vadd.f32 %v915, %v1197
        %v1199 = vpop.f32.mrf.mxu0
        %v1200 = vadd.f32 %v915, %v1199
        %1201 = vmatmul.bf16.gmra.mxu0 %v1036
        %v1202 = vpop.f32.mrf.mxu0
        %v1203 = vadd.f32 %v915, %v1202
        %v1204 = vpop.f32.mrf.mxu0
        %1205 = vdwg.mxu0
        %v1206 = vmax.f32 %v1048, 0.0
        %v1207 = vmax.f32 %v1050, 0.0
        %v1208 = vmax.f32 %v1053, 0.0
        %v1209 = vmax.f32 %v1055, 0.0
        %v1210 = vmax.f32 %v1058, 0.0
        %v1211 = vmax.f32 %v1060, 0.0
        %v1212 = vmax.f32 %v1063, 0.0
        %v1213 = vmax.f32 %v1065, 0.0
        %v1214 = vmax.f32 %v1068, 0.0
        %v1215 = vmax.f32 %v1070, 0.0
        %v1216 = vmax.f32 %v1073, 0.0
        %v1217 = vmax.f32 %v1075, 0.0
        %v1218 = vmax.f32 %v1078, 0.0
        %v1219 = vmax.f32 %v1080, 0.0
        %v1220 = vmax.f32 %v1083, 0.0
        %v1221 = vmax.f32 %v1085, 0.0
        %v1222 = vmax.f32 %v1088, 0.0
        %v1223 = vmax.f32 %v1090, 0.0
        %v1224 = vmax.f32 %v1093, 0.0
        %v1225 = vmax.f32 %v1095, 0.0
        %v1226 = vmax.f32 %v1098, 0.0
        %v1227 = vmax.f32 %v1100, 0.0
        %v1228 = vmax.f32 %v1103, 0.0
        %v1229 = vmax.f32 %v1105, 0.0
        %v1230 = vmax.f32 %v1108, 0.0
        %v1231 = vmax.f32 %v1110, 0.0
        %v1232 = vmax.f32 %v1113, 0.0
        %v1233 = vmax.f32 %v1115, 0.0
        %v1234 = vmax.f32 %v1118, 0.0
        %v1235 = vmax.f32 %v1120, 0.0
        %v1236 = vmax.f32 %v1123, 0.0
        %v1237 = vmax.f32 %v1125, 0.0
        %v1238 = vmax.f32 %v1128, 0.0
        %v1239 = vmax.f32 %v1130, 0.0
        %v1240 = vmax.f32 %v1133, 0.0
        %v1241 = vmax.f32 %v1135, 0.0
        %v1242 = vmax.f32 %v1138, 0.0
        %v1243 = vmax.f32 %v1140, 0.0
        %v1244 = vmax.f32 %v1143, 0.0
        %v1245 = vmax.f32 %v1145, 0.0
        %v1246 = vmax.f32 %v1148, 0.0
        %v1247 = vmax.f32 %v1150, 0.0
        %v1248 = vmax.f32 %v1153, 0.0
        %v1249 = vmax.f32 %v1155, 0.0
        %v1250 = vmax.f32 %v1158, 0.0
        %v1251 = vmax.f32 %v1160, 0.0
        %v1252 = vmax.f32 %v1163, 0.0
        %v1253 = vmax.f32 %v1165, 0.0
        %v1254 = vmax.f32 %v1168, 0.0
        %v1255 = vmax.f32 %v1170, 0.0
        %v1256 = vmax.f32 %v1173, 0.0
        %v1257 = vmax.f32 %v1175, 0.0
        %v1258 = vmax.f32 %v1178, 0.0
        %v1259 = vmax.f32 %v1180, 0.0
        %v1260 = vmax.f32 %v1183, 0.0
        %v1261 = vmax.f32 %v1185, 0.0
        %v1262 = vmax.f32 %v1188, 0.0
        %v1263 = vmax.f32 %v1190, 0.0
        %v1264 = vmax.f32 %v1193, 0.0
        %v1265 = vmax.f32 %v1195, 0.0
        %v1266 = vmax.f32 %v1198, 0.0
        %v1267 = vmax.f32 %v1200, 0.0
        %v1268 = vmax.f32 %v1203, 0.0
        %v1269 = vpack.c.bf16 %v1207, %v1206
        %v1270 = vpack.c.bf16 %v1209, %v1208
        %v1271 = vpack.c.bf16 %v1211, %v1210
        %v1272 = vpack.c.bf16 %v1213, %v1212
        %v1273 = vpack.c.bf16 %v1215, %v1214
        %v1274 = vpack.c.bf16 %v1217, %v1216
        %v1275 = vpack.c.bf16 %v1219, %v1218
        %v1276 = vpack.c.bf16 %v1221, %v1220
        %v1277 = vpack.c.bf16 %v1223, %v1222
        %v1278 = vpack.c.bf16 %v1225, %v1224
        %v1279 = vpack.c.bf16 %v1227, %v1226
        %v1280 = vpack.c.bf16 %v1229, %v1228
        %v1281 = vpack.c.bf16 %v1231, %v1230
        %v1282 = vpack.c.bf16 %v1233, %v1232
        %v1283 = vpack.c.bf16 %v1235, %v1234
        %v1284 = vpack.c.bf16 %v1237, %v1236
        %v1285 = vpack.c.bf16 %v1239, %v1238
        %v1286 = vpack.c.bf16 %v1241, %v1240
        %v1287 = vpack.c.bf16 %v1243, %v1242
        %v1288 = vpack.c.bf16 %v1245, %v1244
        %v1289 = vpack.c.bf16 %v1247, %v1246
        %v1290 = vpack.c.bf16 %v1249, %v1248
        %v1291 = vpack.c.bf16 %v1251, %v1250
        %v1292 = vpack.c.bf16 %v1253, %v1252
        %v1293 = vpack.c.bf16 %v1255, %v1254
        %v1294 = vpack.c.bf16 %v1257, %v1256
        %v1295 = vpack.c.bf16 %v1259, %v1258
        %v1296 = vpack.c.bf16 %v1261, %v1260
        %v1297 = vpack.c.bf16 %v1263, %v1262
        %v1298 = vpack.c.bf16 %v1265, %v1264
        %v1299 = vpack.c.bf16 %v1267, %v1266
        %v1300 = vpack.c.bf16 %v1268, %v1268
        %v1301 = vld [vmem:[%s5] sm:$0xf]
        %v1302 = vld [vmem:[%s5 + $0x4] sm:$0xf]
        %v1303 = vld [vmem:[%s5 + $0x8] sm:$0xf]
        %v1304 = vld [vmem:[%s5 + $0xc] sm:$0xf]
        %v1305 = vld [vmem:[%s6] sm:$0x1]
        %v1307 = vperm.slane %v1305, 0
        %v1313 = vunpack.c.l.b16 %v1301
        %v1314 = vunpack.c.l.b16 %v1302
        %v1315 = vunpack.c.l.b16 %v1303
        %v1316 = vunpack.c.l.b16 %v1304
        %v1317 = vpack.c.b16 %v1314, %v1313
        %v1318 = vpack.c.b16 %v1316, %v1315
        %vm1321 = vcmask 261120
        %v1323 = vsel %vm1321, %v1269, 0
        %v1326 = vsel %vm1321, %v1270, 0
        %v1329 = vsel %vm1321, %v1271, 0
        %v1332 = vsel %vm1321, %v1272, 0
        %v1335 = vsel %vm1321, %v1273, 0
        %v1338 = vsel %vm1321, %v1274, 0
        %v1341 = vsel %vm1321, %v1275, 0
        %v1344 = vsel %vm1321, %v1276, 0
        %v1347 = vsel %vm1321, %v1277, 0
        %v1350 = vsel %vm1321, %v1278, 0
        %v1353 = vsel %vm1321, %v1279, 0
        %v1356 = vsel %vm1321, %v1280, 0
        %v1359 = vsel %vm1321, %v1281, 0
        %v1362 = vsel %vm1321, %v1282, 0
        %v1365 = vsel %vm1321, %v1283, 0
        %v1368 = vsel %vm1321, %v1284, 0
        %v1371 = vsel %vm1321, %v1285, 0
        %v1374 = vsel %vm1321, %v1286, 0
        %v1377 = vsel %vm1321, %v1287, 0
        %v1380 = vsel %vm1321, %v1288, 0
        %v1383 = vsel %vm1321, %v1289, 0
        %v1386 = vsel %vm1321, %v1290, 0
        %v1389 = vsel %vm1321, %v1291, 0
        %v1392 = vsel %vm1321, %v1292, 0
        %v1395 = vsel %vm1321, %v1293, 0
        %v1398 = vsel %vm1321, %v1294, 0
        %v1401 = vsel %vm1321, %v1295, 0
        %v1404 = vsel %vm1321, %v1296, 0
        %v1407 = vsel %vm1321, %v1297, 0
        %v1410 = vsel %vm1321, %v1298, 0
        %v1413 = vsel %vm1321, %v1299, 0
        %v1416 = vsel %vm1321, %v1300, 0
        %1418 = vmatpush.bf16.msra.mxu0 0
        %1419 = vmatpush.bf16.msra.mxu0 0
        %1420 = vmatpush.bf16.msra.mxu0 0
        %1421 = vmatpush.bf16.msra.mxu0 0
        %1422 = vmatpush.bf16.msra.mxu0 0
        %1423 = vmatpush.bf16.msra.mxu0 0
        %1424 = vmatpush.bf16.msra.mxu0 %v1318
        %1425 = vmatpush.bf16.msra.mxu0 %v1317
        %1426 = vmatmul.bf16.gmra.mxu0 %v1323
        %v1427 = vpop.f32.mrf.mxu0
        %v1428 = vadd.f32 %v1307, %v1427
        %v1429 = vpop.f32.mrf.mxu0
        %v1430 = vadd.f32 %v1307, %v1429
        %1431 = vmatmul.bf16.gmra.mxu0 %v1326
        %v1432 = vpop.f32.mrf.mxu0
        %v1433 = vadd.f32 %v1307, %v1432
        %v1434 = vpop.f32.mrf.mxu0
        %v1435 = vadd.f32 %v1307, %v1434
        %1436 = vmatmul.bf16.gmra.mxu0 %v1329
        %v1437 = vpop.f32.mrf.mxu0
        %v1438 = vadd.f32 %v1307, %v1437
        %v1439 = vpop.f32.mrf.mxu0
        %v1440 = vadd.f32 %v1307, %v1439
        %1441 = vmatmul.bf16.gmra.mxu0 %v1332
        %v1442 = vpop.f32.mrf.mxu0
        %v1443 = vadd.f32 %v1307, %v1442
        %v1444 = vpop.f32.mrf.mxu0
        %v1445 = vadd.f32 %v1307, %v1444
        %1446 = vmatmul.bf16.gmra.mxu0 %v1335
        %v1447 = vpop.f32.mrf.mxu0
        %v1448 = vadd.f32 %v1307, %v1447
        %v1449 = vpop.f32.mrf.mxu0
        %v1450 = vadd.f32 %v1307, %v1449
        %1451 = vmatmul.bf16.gmra.mxu0 %v1338
        %v1452 = vpop.f32.mrf.mxu0
        %v1453 = vadd.f32 %v1307, %v1452
        %v1454 = vpop.f32.mrf.mxu0
        %v1455 = vadd.f32 %v1307, %v1454
        %1456 = vmatmul.bf16.gmra.mxu0 %v1341
        %v1457 = vpop.f32.mrf.mxu0
        %v1458 = vadd.f32 %v1307, %v1457
        %v1459 = vpop.f32.mrf.mxu0
        %v1460 = vadd.f32 %v1307, %v1459
        %1461 = vmatmul.bf16.gmra.mxu0 %v1344
        %v1462 = vpop.f32.mrf.mxu0
        %v1463 = vadd.f32 %v1307, %v1462
        %v1464 = vpop.f32.mrf.mxu0
        %v1465 = vadd.f32 %v1307, %v1464
        %1466 = vmatmul.bf16.gmra.mxu0 %v1347
        %v1467 = vpop.f32.mrf.mxu0
        %v1468 = vadd.f32 %v1307, %v1467
        %v1469 = vpop.f32.mrf.mxu0
        %v1470 = vadd.f32 %v1307, %v1469
        %1471 = vmatmul.bf16.gmra.mxu0 %v1350
        %v1472 = vpop.f32.mrf.mxu0
        %v1473 = vadd.f32 %v1307, %v1472
        %v1474 = vpop.f32.mrf.mxu0
        %v1475 = vadd.f32 %v1307, %v1474
        %1476 = vmatmul.bf16.gmra.mxu0 %v1353
        %v1477 = vpop.f32.mrf.mxu0
        %v1478 = vadd.f32 %v1307, %v1477
        %v1479 = vpop.f32.mrf.mxu0
        %v1480 = vadd.f32 %v1307, %v1479
        %1481 = vmatmul.bf16.gmra.mxu0 %v1356
        %v1482 = vpop.f32.mrf.mxu0
        %v1483 = vadd.f32 %v1307, %v1482
        %v1484 = vpop.f32.mrf.mxu0
        %v1485 = vadd.f32 %v1307, %v1484
        %1486 = vmatmul.bf16.gmra.mxu0 %v1359
        %v1487 = vpop.f32.mrf.mxu0
        %v1488 = vadd.f32 %v1307, %v1487
        %v1489 = vpop.f32.mrf.mxu0
        %v1490 = vadd.f32 %v1307, %v1489
        %1491 = vmatmul.bf16.gmra.mxu0 %v1362
        %v1492 = vpop.f32.mrf.mxu0
        %v1493 = vadd.f32 %v1307, %v1492
        %v1494 = vpop.f32.mrf.mxu0
        %v1495 = vadd.f32 %v1307, %v1494
        %1496 = vmatmul.bf16.gmra.mxu0 %v1365
        %v1497 = vpop.f32.mrf.mxu0
        %v1498 = vadd.f32 %v1307, %v1497
        %v1499 = vpop.f32.mrf.mxu0
        %v1500 = vadd.f32 %v1307, %v1499
        %1501 = vmatmul.bf16.gmra.mxu0 %v1368
        %v1502 = vpop.f32.mrf.mxu0
        %v1503 = vadd.f32 %v1307, %v1502
        %v1504 = vpop.f32.mrf.mxu0
        %v1505 = vadd.f32 %v1307, %v1504
        %1506 = vmatmul.bf16.gmra.mxu0 %v1371
        %v1507 = vpop.f32.mrf.mxu0
        %v1508 = vadd.f32 %v1307, %v1507
        %v1509 = vpop.f32.mrf.mxu0
        %v1510 = vadd.f32 %v1307, %v1509
        %1511 = vmatmul.bf16.gmra.mxu0 %v1374
        %v1512 = vpop.f32.mrf.mxu0
        %v1513 = vadd.f32 %v1307, %v1512
        %v1514 = vpop.f32.mrf.mxu0
        %v1515 = vadd.f32 %v1307, %v1514
        %1516 = vmatmul.bf16.gmra.mxu0 %v1377
        %v1517 = vpop.f32.mrf.mxu0
        %v1518 = vadd.f32 %v1307, %v1517
        %v1519 = vpop.f32.mrf.mxu0
        %v1520 = vadd.f32 %v1307, %v1519
        %1521 = vmatmul.bf16.gmra.mxu0 %v1380
        %v1522 = vpop.f32.mrf.mxu0
        %v1523 = vadd.f32 %v1307, %v1522
        %v1524 = vpop.f32.mrf.mxu0
        %v1525 = vadd.f32 %v1307, %v1524
        %1526 = vmatmul.bf16.gmra.mxu0 %v1383
        %v1527 = vpop.f32.mrf.mxu0
        %v1528 = vadd.f32 %v1307, %v1527
        %v1529 = vpop.f32.mrf.mxu0
        %v1530 = vadd.f32 %v1307, %v1529
        %1531 = vmatmul.bf16.gmra.mxu0 %v1386
        %v1532 = vpop.f32.mrf.mxu0
        %v1533 = vadd.f32 %v1307, %v1532
        %v1534 = vpop.f32.mrf.mxu0
        %v1535 = vadd.f32 %v1307, %v1534
        %1536 = vmatmul.bf16.gmra.mxu0 %v1389
        %v1537 = vpop.f32.mrf.mxu0
        %v1538 = vadd.f32 %v1307, %v1537
        %v1539 = vpop.f32.mrf.mxu0
        %v1540 = vadd.f32 %v1307, %v1539
        %1541 = vmatmul.bf16.gmra.mxu0 %v1392
        %v1542 = vpop.f32.mrf.mxu0
        %v1543 = vadd.f32 %v1307, %v1542
        %v1544 = vpop.f32.mrf.mxu0
        %v1545 = vadd.f32 %v1307, %v1544
        %1546 = vmatmul.bf16.gmra.mxu0 %v1395
        %v1547 = vpop.f32.mrf.mxu0
        %v1548 = vadd.f32 %v1307, %v1547
        %v1549 = vpop.f32.mrf.mxu0
        %v1550 = vadd.f32 %v1307, %v1549
        %1551 = vmatmul.bf16.gmra.mxu0 %v1398
        %v1552 = vpop.f32.mrf.mxu0
        %v1553 = vadd.f32 %v1307, %v1552
        %v1554 = vpop.f32.mrf.mxu0
        %v1555 = vadd.f32 %v1307, %v1554
        %1556 = vmatmul.bf16.gmra.mxu0 %v1401
        %v1557 = vpop.f32.mrf.mxu0
        %v1558 = vadd.f32 %v1307, %v1557
        %v1559 = vpop.f32.mrf.mxu0
        %v1560 = vadd.f32 %v1307, %v1559
        %1561 = vmatmul.bf16.gmra.mxu0 %v1404
        %v1562 = vpop.f32.mrf.mxu0
        %v1563 = vadd.f32 %v1307, %v1562
        %v1564 = vpop.f32.mrf.mxu0
        %v1565 = vadd.f32 %v1307, %v1564
        %1566 = vmatmul.bf16.gmra.mxu0 %v1407
        %v1567 = vpop.f32.mrf.mxu0
        %v1568 = vadd.f32 %v1307, %v1567
        %v1569 = vpop.f32.mrf.mxu0
        %v1570 = vadd.f32 %v1307, %v1569
        %1571 = vmatmul.bf16.gmra.mxu0 %v1410
        %v1572 = vpop.f32.mrf.mxu0
        %v1573 = vadd.f32 %v1307, %v1572
        %v1574 = vpop.f32.mrf.mxu0
        %v1575 = vadd.f32 %v1307, %v1574
        %1576 = vmatmul.bf16.gmra.mxu0 %v1413
        %v1577 = vpop.f32.mrf.mxu0
        %v1578 = vadd.f32 %v1307, %v1577
        %v1579 = vpop.f32.mrf.mxu0
        %v1580 = vadd.f32 %v1307, %v1579
        %1581 = vmatmul.bf16.gmra.mxu0 %v1416
        %v1582 = vpop.f32.mrf.mxu0
        %v1583 = vadd.f32 %v1307, %v1582
        %v1584 = vpop.f32.mrf.mxu0
        %1585 = vdwg.mxu0
        %v1586 = vmax.f32 %v1428, 0.0
        %v1587 = vmax.f32 %v1430, 0.0
        %v1588 = vmax.f32 %v1433, 0.0
        %v1589 = vmax.f32 %v1435, 0.0
        %v1590 = vmax.f32 %v1438, 0.0
        %v1591 = vmax.f32 %v1440, 0.0
        %v1592 = vmax.f32 %v1443, 0.0
        %v1593 = vmax.f32 %v1445, 0.0
        %v1594 = vmax.f32 %v1448, 0.0
        %v1595 = vmax.f32 %v1450, 0.0
        %v1596 = vmax.f32 %v1453, 0.0
        %v1597 = vmax.f32 %v1455, 0.0
        %v1598 = vmax.f32 %v1458, 0.0
        %v1599 = vmax.f32 %v1460, 0.0
        %v1600 = vmax.f32 %v1463, 0.0
        %v1601 = vmax.f32 %v1465, 0.0
        %v1602 = vmax.f32 %v1468, 0.0
        %v1603 = vmax.f32 %v1470, 0.0
        %v1604 = vmax.f32 %v1473, 0.0
        %v1605 = vmax.f32 %v1475, 0.0
        %v1606 = vmax.f32 %v1478, 0.0
        %v1607 = vmax.f32 %v1480, 0.0
        %v1608 = vmax.f32 %v1483, 0.0
        %v1609 = vmax.f32 %v1485, 0.0
        %v1610 = vmax.f32 %v1488, 0.0
        %v1611 = vmax.f32 %v1490, 0.0
        %v1612 = vmax.f32 %v1493, 0.0
        %v1613 = vmax.f32 %v1495, 0.0
        %v1614 = vmax.f32 %v1498, 0.0
        %v1615 = vmax.f32 %v1500, 0.0
        %v1616 = vmax.f32 %v1503, 0.0
        %v1617 = vmax.f32 %v1505, 0.0
        %v1618 = vmax.f32 %v1508, 0.0
        %v1619 = vmax.f32 %v1510, 0.0
        %v1620 = vmax.f32 %v1513, 0.0
        %v1621 = vmax.f32 %v1515, 0.0
        %v1622 = vmax.f32 %v1518, 0.0
        %v1623 = vmax.f32 %v1520, 0.0
        %v1624 = vmax.f32 %v1523, 0.0
        %v1625 = vmax.f32 %v1525, 0.0
        %v1626 = vmax.f32 %v1528, 0.0
        %v1627 = vmax.f32 %v1530, 0.0
        %v1628 = vmax.f32 %v1533, 0.0
        %v1629 = vmax.f32 %v1535, 0.0
        %v1630 = vmax.f32 %v1538, 0.0
        %v1631 = vmax.f32 %v1540, 0.0
        %v1632 = vmax.f32 %v1543, 0.0
        %v1633 = vmax.f32 %v1545, 0.0
        %v1634 = vmax.f32 %v1548, 0.0
        %v1635 = vmax.f32 %v1550, 0.0
        %v1636 = vmax.f32 %v1553, 0.0
        %v1637 = vmax.f32 %v1555, 0.0
        %v1638 = vmax.f32 %v1558, 0.0
        %v1639 = vmax.f32 %v1560, 0.0
        %v1640 = vmax.f32 %v1563, 0.0
        %v1641 = vmax.f32 %v1565, 0.0
        %v1642 = vmax.f32 %v1568, 0.0
        %v1643 = vmax.f32 %v1570, 0.0
        %v1644 = vmax.f32 %v1573, 0.0
        %v1645 = vmax.f32 %v1575, 0.0
        %v1646 = vmax.f32 %v1578, 0.0
        %v1647 = vmax.f32 %v1580, 0.0
        %v1648 = vmax.f32 %v1583, 0.0
        %v1649 = vpack.c.bf16 %v1587, %v1586
        %v1650 = vpack.c.bf16 %v1589, %v1588
        %v1651 = vpack.c.bf16 %v1591, %v1590
        %v1652 = vpack.c.bf16 %v1593, %v1592
        %v1653 = vpack.c.bf16 %v1595, %v1594
        %v1654 = vpack.c.bf16 %v1597, %v1596
        %v1655 = vpack.c.bf16 %v1599, %v1598
        %v1656 = vpack.c.bf16 %v1601, %v1600
        %v1657 = vpack.c.bf16 %v1603, %v1602
        %v1658 = vpack.c.bf16 %v1605, %v1604
        %v1659 = vpack.c.bf16 %v1607, %v1606
        %v1660 = vpack.c.bf16 %v1609, %v1608
        %v1661 = vpack.c.bf16 %v1611, %v1610
        %v1662 = vpack.c.bf16 %v1613, %v1612
        %v1663 = vpack.c.bf16 %v1615, %v1614
        %v1664 = vpack.c.bf16 %v1617, %v1616
        %v1665 = vpack.c.bf16 %v1619, %v1618
        %v1666 = vpack.c.bf16 %v1621, %v1620
        %v1667 = vpack.c.bf16 %v1623, %v1622
        %v1668 = vpack.c.bf16 %v1625, %v1624
        %v1669 = vpack.c.bf16 %v1627, %v1626
        %v1670 = vpack.c.bf16 %v1629, %v1628
        %v1671 = vpack.c.bf16 %v1631, %v1630
        %v1672 = vpack.c.bf16 %v1633, %v1632
        %v1673 = vpack.c.bf16 %v1635, %v1634
        %v1674 = vpack.c.bf16 %v1637, %v1636
        %v1675 = vpack.c.bf16 %v1639, %v1638
        %v1676 = vpack.c.bf16 %v1641, %v1640
        %v1677 = vpack.c.bf16 %v1643, %v1642
        %v1678 = vpack.c.bf16 %v1645, %v1644
        %v1679 = vpack.c.bf16 %v1647, %v1646
        %v1680 = vpack.c.bf16 %v1648, %v1648
        %v1681 = vld [vmem:[%s7] sm:$0xf]
        %v1682 = vld [vmem:[%s7 + $0x4] sm:$0xf]
        %v1683 = vld [vmem:[%s8] sm:$0x1]
        %v1685 = vperm.slane %v1683, 0
        %v1689 = vunpack.c.l.b16 %v1681
        %v1690 = vunpack.c.l.b16 %v1682
        %v1691 = vpack.c.b16 %v1690, %v1689
        %vm1693 = vcmask 130048
        %v1695 = vsel %vm1693, %v1649, 0
        %v1698 = vsel %vm1693, %v1650, 0
        %v1701 = vsel %vm1693, %v1651, 0
        %v1704 = vsel %vm1693, %v1652, 0
        %v1707 = vsel %vm1693, %v1653, 0
        %v1710 = vsel %vm1693, %v1654, 0
        %v1713 = vsel %vm1693, %v1655, 0
        %v1716 = vsel %vm1693, %v1656, 0
        %v1719 = vsel %vm1693, %v1657, 0
        %v1722 = vsel %vm1693, %v1658, 0
        %v1725 = vsel %vm1693, %v1659, 0
        %v1728 = vsel %vm1693, %v1660, 0
        %v1731 = vsel %vm1693, %v1661, 0
        %v1734 = vsel %vm1693, %v1662, 0
        %v1737 = vsel %vm1693, %v1663, 0
        %v1740 = vsel %vm1693, %v1664, 0
        %v1743 = vsel %vm1693, %v1665, 0
        %v1746 = vsel %vm1693, %v1666, 0
        %v1749 = vsel %vm1693, %v1667, 0
        %v1752 = vsel %vm1693, %v1668, 0
        %v1755 = vsel %vm1693, %v1669, 0
        %v1758 = vsel %vm1693, %v1670, 0
        %v1761 = vsel %vm1693, %v1671, 0
        %v1764 = vsel %vm1693, %v1672, 0
        %v1767 = vsel %vm1693, %v1673, 0
        %v1770 = vsel %vm1693, %v1674, 0
        %v1773 = vsel %vm1693, %v1675, 0
        %v1776 = vsel %vm1693, %v1676, 0
        %v1779 = vsel %vm1693, %v1677, 0
        %v1782 = vsel %vm1693, %v1678, 0
        %v1785 = vsel %vm1693, %v1679, 0
        %v1788 = vsel %vm1693, %v1680, 0
        %1790 = vmatpush.bf16.msra.mxu0 0
        %1791 = vmatpush.bf16.msra.mxu0 0
        %1792 = vmatpush.bf16.msra.mxu0 0
        %1793 = vmatpush.bf16.msra.mxu0 0
        %1794 = vmatpush.bf16.msra.mxu0 0
        %1795 = vmatpush.bf16.msra.mxu0 0
        %1796 = vmatpush.bf16.msra.mxu0 0
        %1797 = vmatpush.bf16.msra.mxu0 %v1691
        %1798 = vmatmul.bf16.gmra.mxu0 %v1695
        %v1799 = vpop.f32.mrf.mxu0
        %v1800 = vadd.f32 %v1685, %v1799
        %v1801 = vpop.f32.mrf.mxu0
        %v1802 = vadd.f32 %v1685, %v1801
        %1803 = vmatmul.bf16.gmra.mxu0 %v1698
        %v1804 = vpop.f32.mrf.mxu0
        %v1805 = vadd.f32 %v1685, %v1804
        %v1806 = vpop.f32.mrf.mxu0
        %v1807 = vadd.f32 %v1685, %v1806
        %1808 = vmatmul.bf16.gmra.mxu0 %v1701
        %v1809 = vpop.f32.mrf.mxu0
        %v1810 = vadd.f32 %v1685, %v1809
        %v1811 = vpop.f32.mrf.mxu0
        %v1812 = vadd.f32 %v1685, %v1811
        %1813 = vmatmul.bf16.gmra.mxu0 %v1704
        %v1814 = vpop.f32.mrf.mxu0
        %v1815 = vadd.f32 %v1685, %v1814
        %v1816 = vpop.f32.mrf.mxu0
        %v1817 = vadd.f32 %v1685, %v1816
        %1818 = vmatmul.bf16.gmra.mxu0 %v1707
        %v1819 = vpop.f32.mrf.mxu0
        %v1820 = vadd.f32 %v1685, %v1819
        %v1821 = vpop.f32.mrf.mxu0
        %v1822 = vadd.f32 %v1685, %v1821
        %1823 = vmatmul.bf16.gmra.mxu0 %v1710
        %v1824 = vpop.f32.mrf.mxu0
        %v1825 = vadd.f32 %v1685, %v1824
        %v1826 = vpop.f32.mrf.mxu0
        %v1827 = vadd.f32 %v1685, %v1826
        %1828 = vmatmul.bf16.gmra.mxu0 %v1713
        %v1829 = vpop.f32.mrf.mxu0
        %v1830 = vadd.f32 %v1685, %v1829
        %v1831 = vpop.f32.mrf.mxu0
        %v1832 = vadd.f32 %v1685, %v1831
        %1833 = vmatmul.bf16.gmra.mxu0 %v1716
        %v1834 = vpop.f32.mrf.mxu0
        %v1835 = vadd.f32 %v1685, %v1834
        %v1836 = vpop.f32.mrf.mxu0
        %v1837 = vadd.f32 %v1685, %v1836
        %1838 = vmatmul.bf16.gmra.mxu0 %v1719
        %v1839 = vpop.f32.mrf.mxu0
        %v1840 = vadd.f32 %v1685, %v1839
        %v1841 = vpop.f32.mrf.mxu0
        %v1842 = vadd.f32 %v1685, %v1841
        %1843 = vmatmul.bf16.gmra.mxu0 %v1722
        %v1844 = vpop.f32.mrf.mxu0
        %v1845 = vadd.f32 %v1685, %v1844
        %v1846 = vpop.f32.mrf.mxu0
        %v1847 = vadd.f32 %v1685, %v1846
        %1848 = vmatmul.bf16.gmra.mxu0 %v1725
        %v1849 = vpop.f32.mrf.mxu0
        %v1850 = vadd.f32 %v1685, %v1849
        %v1851 = vpop.f32.mrf.mxu0
        %v1852 = vadd.f32 %v1685, %v1851
        %1853 = vmatmul.bf16.gmra.mxu0 %v1728
        %v1854 = vpop.f32.mrf.mxu0
        %v1855 = vadd.f32 %v1685, %v1854
        %v1856 = vpop.f32.mrf.mxu0
        %v1857 = vadd.f32 %v1685, %v1856
        %1858 = vmatmul.bf16.gmra.mxu0 %v1731
        %v1859 = vpop.f32.mrf.mxu0
        %v1860 = vadd.f32 %v1685, %v1859
        %v1861 = vpop.f32.mrf.mxu0
        %v1862 = vadd.f32 %v1685, %v1861
        %1863 = vmatmul.bf16.gmra.mxu0 %v1734
        %v1864 = vpop.f32.mrf.mxu0
        %v1865 = vadd.f32 %v1685, %v1864
        %v1866 = vpop.f32.mrf.mxu0
        %v1867 = vadd.f32 %v1685, %v1866
        %1868 = vmatmul.bf16.gmra.mxu0 %v1737
        %v1869 = vpop.f32.mrf.mxu0
        %v1870 = vadd.f32 %v1685, %v1869
        %v1871 = vpop.f32.mrf.mxu0
        %v1872 = vadd.f32 %v1685, %v1871
        %1873 = vmatmul.bf16.gmra.mxu0 %v1740
        %v1874 = vpop.f32.mrf.mxu0
        %v1875 = vadd.f32 %v1685, %v1874
        %v1876 = vpop.f32.mrf.mxu0
        %v1877 = vadd.f32 %v1685, %v1876
        %1878 = vmatmul.bf16.gmra.mxu0 %v1743
        %v1879 = vpop.f32.mrf.mxu0
        %v1880 = vadd.f32 %v1685, %v1879
        %v1881 = vpop.f32.mrf.mxu0
        %v1882 = vadd.f32 %v1685, %v1881
        %1883 = vmatmul.bf16.gmra.mxu0 %v1746
        %v1884 = vpop.f32.mrf.mxu0
        %v1885 = vadd.f32 %v1685, %v1884
        %v1886 = vpop.f32.mrf.mxu0
        %v1887 = vadd.f32 %v1685, %v1886
        %1888 = vmatmul.bf16.gmra.mxu0 %v1749
        %v1889 = vpop.f32.mrf.mxu0
        %v1890 = vadd.f32 %v1685, %v1889
        %v1891 = vpop.f32.mrf.mxu0
        %v1892 = vadd.f32 %v1685, %v1891
        %1893 = vmatmul.bf16.gmra.mxu0 %v1752
        %v1894 = vpop.f32.mrf.mxu0
        %v1895 = vadd.f32 %v1685, %v1894
        %v1896 = vpop.f32.mrf.mxu0
        %v1897 = vadd.f32 %v1685, %v1896
        %1898 = vmatmul.bf16.gmra.mxu0 %v1755
        %v1899 = vpop.f32.mrf.mxu0
        %v1900 = vadd.f32 %v1685, %v1899
        %v1901 = vpop.f32.mrf.mxu0
        %v1902 = vadd.f32 %v1685, %v1901
        %1903 = vmatmul.bf16.gmra.mxu0 %v1758
        %v1904 = vpop.f32.mrf.mxu0
        %v1905 = vadd.f32 %v1685, %v1904
        %v1906 = vpop.f32.mrf.mxu0
        %v1907 = vadd.f32 %v1685, %v1906
        %1908 = vmatmul.bf16.gmra.mxu0 %v1761
        %v1909 = vpop.f32.mrf.mxu0
        %v1910 = vadd.f32 %v1685, %v1909
        %v1911 = vpop.f32.mrf.mxu0
        %v1912 = vadd.f32 %v1685, %v1911
        %1913 = vmatmul.bf16.gmra.mxu0 %v1764
        %v1914 = vpop.f32.mrf.mxu0
        %v1915 = vadd.f32 %v1685, %v1914
        %v1916 = vpop.f32.mrf.mxu0
        %v1917 = vadd.f32 %v1685, %v1916
        %1918 = vmatmul.bf16.gmra.mxu0 %v1767
        %v1919 = vpop.f32.mrf.mxu0
        %v1920 = vadd.f32 %v1685, %v1919
        %v1921 = vpop.f32.mrf.mxu0
        %v1922 = vadd.f32 %v1685, %v1921
        %1923 = vmatmul.bf16.gmra.mxu0 %v1770
        %v1924 = vpop.f32.mrf.mxu0
        %v1925 = vadd.f32 %v1685, %v1924
        %v1926 = vpop.f32.mrf.mxu0
        %v1927 = vadd.f32 %v1685, %v1926
        %1928 = vmatmul.bf16.gmra.mxu0 %v1773
        %v1929 = vpop.f32.mrf.mxu0
        %v1930 = vadd.f32 %v1685, %v1929
        %v1931 = vpop.f32.mrf.mxu0
        %v1932 = vadd.f32 %v1685, %v1931
        %1933 = vmatmul.bf16.gmra.mxu0 %v1776
        %v1934 = vpop.f32.mrf.mxu0
        %v1935 = vadd.f32 %v1685, %v1934
        %v1936 = vpop.f32.mrf.mxu0
        %v1937 = vadd.f32 %v1685, %v1936
        %1938 = vmatmul.bf16.gmra.mxu0 %v1779
        %v1939 = vpop.f32.mrf.mxu0
        %v1940 = vadd.f32 %v1685, %v1939
        %v1941 = vpop.f32.mrf.mxu0
        %v1942 = vadd.f32 %v1685, %v1941
        %1943 = vmatmul.bf16.gmra.mxu0 %v1782
        %v1944 = vpop.f32.mrf.mxu0
        %v1945 = vadd.f32 %v1685, %v1944
        %v1946 = vpop.f32.mrf.mxu0
        %v1947 = vadd.f32 %v1685, %v1946
        %1948 = vmatmul.bf16.gmra.mxu0 %v1785
        %v1949 = vpop.f32.mrf.mxu0
        %v1950 = vadd.f32 %v1685, %v1949
        %v1951 = vpop.f32.mrf.mxu0
        %v1952 = vadd.f32 %v1685, %v1951
        %1953 = vmatmul.bf16.gmra.mxu0 %v1788
        %v1954 = vpop.f32.mrf.mxu0
        %v1955 = vadd.f32 %v1685, %v1954
        %v1956 = vpop.f32.mrf.mxu0
        %1957 = vdwg.mxu0
        %v1958 = vmax.f32 %v1800, 0.0
        %v1959 = vmax.f32 %v1802, 0.0
        %v1960 = vmax.f32 %v1805, 0.0
        %v1961 = vmax.f32 %v1807, 0.0
        %v1962 = vmax.f32 %v1810, 0.0
        %v1963 = vmax.f32 %v1812, 0.0
        %v1964 = vmax.f32 %v1815, 0.0
        %v1965 = vmax.f32 %v1817, 0.0
        %v1966 = vmax.f32 %v1820, 0.0
        %v1967 = vmax.f32 %v1822, 0.0
        %v1968 = vmax.f32 %v1825, 0.0
        %v1969 = vmax.f32 %v1827, 0.0
        %v1970 = vmax.f32 %v1830, 0.0
        %v1971 = vmax.f32 %v1832, 0.0
        %v1972 = vmax.f32 %v1835, 0.0
        %v1973 = vmax.f32 %v1837, 0.0
        %v1974 = vmax.f32 %v1840, 0.0
        %v1975 = vmax.f32 %v1842, 0.0
        %v1976 = vmax.f32 %v1845, 0.0
        %v1977 = vmax.f32 %v1847, 0.0
        %v1978 = vmax.f32 %v1850, 0.0
        %v1979 = vmax.f32 %v1852, 0.0
        %v1980 = vmax.f32 %v1855, 0.0
        %v1981 = vmax.f32 %v1857, 0.0
        %v1982 = vmax.f32 %v1860, 0.0
        %v1983 = vmax.f32 %v1862, 0.0
        %v1984 = vmax.f32 %v1865, 0.0
        %v1985 = vmax.f32 %v1867, 0.0
        %v1986 = vmax.f32 %v1870, 0.0
        %v1987 = vmax.f32 %v1872, 0.0
        %v1988 = vmax.f32 %v1875, 0.0
        %v1989 = vmax.f32 %v1877, 0.0
        %v1990 = vmax.f32 %v1880, 0.0
        %v1991 = vmax.f32 %v1882, 0.0
        %v1992 = vmax.f32 %v1885, 0.0
        %v1993 = vmax.f32 %v1887, 0.0
        %v1994 = vmax.f32 %v1890, 0.0
        %v1995 = vmax.f32 %v1892, 0.0
        %v1996 = vmax.f32 %v1895, 0.0
        %v1997 = vmax.f32 %v1897, 0.0
        %v1998 = vmax.f32 %v1900, 0.0
        %v1999 = vmax.f32 %v1902, 0.0
        %v2000 = vmax.f32 %v1905, 0.0
        %v2001 = vmax.f32 %v1907, 0.0
        %v2002 = vmax.f32 %v1910, 0.0
        %v2003 = vmax.f32 %v1912, 0.0
        %v2004 = vmax.f32 %v1915, 0.0
        %v2005 = vmax.f32 %v1917, 0.0
        %v2006 = vmax.f32 %v1920, 0.0
        %v2007 = vmax.f32 %v1922, 0.0
        %v2008 = vmax.f32 %v1925, 0.0
        %v2009 = vmax.f32 %v1927, 0.0
        %v2010 = vmax.f32 %v1930, 0.0
        %v2011 = vmax.f32 %v1932, 0.0
        %v2012 = vmax.f32 %v1935, 0.0
        %v2013 = vmax.f32 %v1937, 0.0
        %v2014 = vmax.f32 %v1940, 0.0
        %v2015 = vmax.f32 %v1942, 0.0
        %v2016 = vmax.f32 %v1945, 0.0
        %v2017 = vmax.f32 %v1947, 0.0
        %v2018 = vmax.f32 %v1950, 0.0
        %v2019 = vmax.f32 %v1952, 0.0
        %v2020 = vmax.f32 %v1955, 0.0
        %v2021 = vpack.c.bf16 %v1959, %v1958
        %v2022 = vpack.c.bf16 %v1961, %v1960
        %v2023 = vpack.c.bf16 %v1963, %v1962
        %v2024 = vpack.c.bf16 %v1965, %v1964
        %v2025 = vpack.c.bf16 %v1967, %v1966
        %v2026 = vpack.c.bf16 %v1969, %v1968
        %v2027 = vpack.c.bf16 %v1971, %v1970
        %v2028 = vpack.c.bf16 %v1973, %v1972
        %v2029 = vpack.c.bf16 %v1975, %v1974
        %v2030 = vpack.c.bf16 %v1977, %v1976
        %v2031 = vpack.c.bf16 %v1979, %v1978
        %v2032 = vpack.c.bf16 %v1981, %v1980
        %v2033 = vpack.c.bf16 %v1983, %v1982
        %v2034 = vpack.c.bf16 %v1985, %v1984
        %v2035 = vpack.c.bf16 %v1987, %v1986
        %v2036 = vpack.c.bf16 %v1989, %v1988
        %v2037 = vpack.c.bf16 %v1991, %v1990
        %v2038 = vpack.c.bf16 %v1993, %v1992
        %v2039 = vpack.c.bf16 %v1995, %v1994
        %v2040 = vpack.c.bf16 %v1997, %v1996
        %v2041 = vpack.c.bf16 %v1999, %v1998
        %v2042 = vpack.c.bf16 %v2001, %v2000
        %v2043 = vpack.c.bf16 %v2003, %v2002
        %v2044 = vpack.c.bf16 %v2005, %v2004
        %v2045 = vpack.c.bf16 %v2007, %v2006
        %v2046 = vpack.c.bf16 %v2009, %v2008
        %v2047 = vpack.c.bf16 %v2011, %v2010
        %v2048 = vpack.c.bf16 %v2013, %v2012
        %v2049 = vpack.c.bf16 %v2015, %v2014
        %v2050 = vpack.c.bf16 %v2017, %v2016
        %v2051 = vpack.c.bf16 %v2019, %v2018
        %v2052 = vpack.c.bf16 %v2020, %v2020
        %v2053 = vld [vmem:[%s9] sm:$0xf]
        %v2054 = vld [vmem:[%s9 + $0x4] sm:$0xf]
        %v2055 = vld [vmem:[%s9 + $0x8] sm:$0xf]
        %v2056 = vld [vmem:[%s9 + $0xc] sm:$0xf]
        %v2057 = vld [vmem:[%s10] sm:$0x1]
        %v2059 = vperm.slane %v2057, 0
        %v2065 = vunpack.c.l.b16 %v2053
        %v2066 = vunpack.c.l.b16 %v2054
        %v2067 = vunpack.c.l.b16 %v2055
        %v2068 = vunpack.c.l.b16 %v2056
        %v2069 = vpack.c.b16 %v2066, %v2065
        %v2070 = vpack.c.b16 %v2068, %v2067
        %v2074 = vsel %vm1321, %v2021, 0
        %v2077 = vsel %vm1321, %v2022, 0
        %v2080 = vsel %vm1321, %v2023, 0
        %v2083 = vsel %vm1321, %v2024, 0
        %v2086 = vsel %vm1321, %v2025, 0
        %v2089 = vsel %vm1321, %v2026, 0
        %v2092 = vsel %vm1321, %v2027, 0
        %v2095 = vsel %vm1321, %v2028, 0
        %v2098 = vsel %vm1321, %v2029, 0
        %v2101 = vsel %vm1321, %v2030, 0
        %v2104 = vsel %vm1321, %v2031, 0
        %v2107 = vsel %vm1321, %v2032, 0
        %v2110 = vsel %vm1321, %v2033, 0
        %v2113 = vsel %vm1321, %v2034, 0
        %v2116 = vsel %vm1321, %v2035, 0
        %v2119 = vsel %vm1321, %v2036, 0
        %v2122 = vsel %vm1321, %v2037, 0
        %v2125 = vsel %vm1321, %v2038, 0
        %v2128 = vsel %vm1321, %v2039, 0
        %v2131 = vsel %vm1321, %v2040, 0
        %v2134 = vsel %vm1321, %v2041, 0
        %v2137 = vsel %vm1321, %v2042, 0
        %v2140 = vsel %vm1321, %v2043, 0
        %v2143 = vsel %vm1321, %v2044, 0
        %v2146 = vsel %vm1321, %v2045, 0
        %v2149 = vsel %vm1321, %v2046, 0
        %v2152 = vsel %vm1321, %v2047, 0
        %v2155 = vsel %vm1321, %v2048, 0
        %v2158 = vsel %vm1321, %v2049, 0
        %v2161 = vsel %vm1321, %v2050, 0
        %v2164 = vsel %vm1321, %v2051, 0
        %v2167 = vsel %vm1321, %v2052, 0
        %2169 = vmatpush.bf16.msra.mxu0 0
        %2170 = vmatpush.bf16.msra.mxu0 0
        %2171 = vmatpush.bf16.msra.mxu0 0
        %2172 = vmatpush.bf16.msra.mxu0 0
        %2173 = vmatpush.bf16.msra.mxu0 0
        %2174 = vmatpush.bf16.msra.mxu0 0
        %2175 = vmatpush.bf16.msra.mxu0 %v2070
        %2176 = vmatpush.bf16.msra.mxu0 %v2069
        %2177 = vmatmul.bf16.gmra.mxu0 %v2074
        %v2178 = vpop.f32.mrf.mxu0
        %v2179 = vadd.f32 %v2059, %v2178
        %v2180 = vpop.f32.mrf.mxu0
        %v2181 = vadd.f32 %v2059, %v2180
        %2182 = vmatmul.bf16.gmra.mxu0 %v2077
        %v2183 = vpop.f32.mrf.mxu0
        %v2184 = vadd.f32 %v2059, %v2183
        %v2185 = vpop.f32.mrf.mxu0
        %v2186 = vadd.f32 %v2059, %v2185
        %2187 = vmatmul.bf16.gmra.mxu0 %v2080
        %v2188 = vpop.f32.mrf.mxu0
        %v2189 = vadd.f32 %v2059, %v2188
        %v2190 = vpop.f32.mrf.mxu0
        %v2191 = vadd.f32 %v2059, %v2190
        %2192 = vmatmul.bf16.gmra.mxu0 %v2083
        %v2193 = vpop.f32.mrf.mxu0
        %v2194 = vadd.f32 %v2059, %v2193
        %v2195 = vpop.f32.mrf.mxu0
        %v2196 = vadd.f32 %v2059, %v2195
        %2197 = vmatmul.bf16.gmra.mxu0 %v2086
        %v2198 = vpop.f32.mrf.mxu0
        %v2199 = vadd.f32 %v2059, %v2198
        %v2200 = vpop.f32.mrf.mxu0
        %v2201 = vadd.f32 %v2059, %v2200
        %2202 = vmatmul.bf16.gmra.mxu0 %v2089
        %v2203 = vpop.f32.mrf.mxu0
        %v2204 = vadd.f32 %v2059, %v2203
        %v2205 = vpop.f32.mrf.mxu0
        %v2206 = vadd.f32 %v2059, %v2205
        %2207 = vmatmul.bf16.gmra.mxu0 %v2092
        %v2208 = vpop.f32.mrf.mxu0
        %v2209 = vadd.f32 %v2059, %v2208
        %v2210 = vpop.f32.mrf.mxu0
        %v2211 = vadd.f32 %v2059, %v2210
        %2212 = vmatmul.bf16.gmra.mxu0 %v2095
        %v2213 = vpop.f32.mrf.mxu0
        %v2214 = vadd.f32 %v2059, %v2213
        %v2215 = vpop.f32.mrf.mxu0
        %v2216 = vadd.f32 %v2059, %v2215
        %2217 = vmatmul.bf16.gmra.mxu0 %v2098
        %v2218 = vpop.f32.mrf.mxu0
        %v2219 = vadd.f32 %v2059, %v2218
        %v2220 = vpop.f32.mrf.mxu0
        %v2221 = vadd.f32 %v2059, %v2220
        %2222 = vmatmul.bf16.gmra.mxu0 %v2101
        %v2223 = vpop.f32.mrf.mxu0
        %v2224 = vadd.f32 %v2059, %v2223
        %v2225 = vpop.f32.mrf.mxu0
        %v2226 = vadd.f32 %v2059, %v2225
        %2227 = vmatmul.bf16.gmra.mxu0 %v2104
        %v2228 = vpop.f32.mrf.mxu0
        %v2229 = vadd.f32 %v2059, %v2228
        %v2230 = vpop.f32.mrf.mxu0
        %v2231 = vadd.f32 %v2059, %v2230
        %2232 = vmatmul.bf16.gmra.mxu0 %v2107
        %v2233 = vpop.f32.mrf.mxu0
        %v2234 = vadd.f32 %v2059, %v2233
        %v2235 = vpop.f32.mrf.mxu0
        %v2236 = vadd.f32 %v2059, %v2235
        %2237 = vmatmul.bf16.gmra.mxu0 %v2110
        %v2238 = vpop.f32.mrf.mxu0
        %v2239 = vadd.f32 %v2059, %v2238
        %v2240 = vpop.f32.mrf.mxu0
        %v2241 = vadd.f32 %v2059, %v2240
        %2242 = vmatmul.bf16.gmra.mxu0 %v2113
        %v2243 = vpop.f32.mrf.mxu0
        %v2244 = vadd.f32 %v2059, %v2243
        %v2245 = vpop.f32.mrf.mxu0
        %v2246 = vadd.f32 %v2059, %v2245
        %2247 = vmatmul.bf16.gmra.mxu0 %v2116
        %v2248 = vpop.f32.mrf.mxu0
        %v2249 = vadd.f32 %v2059, %v2248
        %v2250 = vpop.f32.mrf.mxu0
        %v2251 = vadd.f32 %v2059, %v2250
        %2252 = vmatmul.bf16.gmra.mxu0 %v2119
        %v2253 = vpop.f32.mrf.mxu0
        %v2254 = vadd.f32 %v2059, %v2253
        %v2255 = vpop.f32.mrf.mxu0
        %v2256 = vadd.f32 %v2059, %v2255
        %2257 = vmatmul.bf16.gmra.mxu0 %v2122
        %v2258 = vpop.f32.mrf.mxu0
        %v2259 = vadd.f32 %v2059, %v2258
        %v2260 = vpop.f32.mrf.mxu0
        %v2261 = vadd.f32 %v2059, %v2260
        %2262 = vmatmul.bf16.gmra.mxu0 %v2125
        %v2263 = vpop.f32.mrf.mxu0
        %v2264 = vadd.f32 %v2059, %v2263
        %v2265 = vpop.f32.mrf.mxu0
        %v2266 = vadd.f32 %v2059, %v2265
        %2267 = vmatmul.bf16.gmra.mxu0 %v2128
        %v2268 = vpop.f32.mrf.mxu0
        %v2269 = vadd.f32 %v2059, %v2268
        %v2270 = vpop.f32.mrf.mxu0
        %v2271 = vadd.f32 %v2059, %v2270
        %2272 = vmatmul.bf16.gmra.mxu0 %v2131
        %v2273 = vpop.f32.mrf.mxu0
        %v2274 = vadd.f32 %v2059, %v2273
        %v2275 = vpop.f32.mrf.mxu0
        %v2276 = vadd.f32 %v2059, %v2275
        %2277 = vmatmul.bf16.gmra.mxu0 %v2134
        %v2278 = vpop.f32.mrf.mxu0
        %v2279 = vadd.f32 %v2059, %v2278
        %v2280 = vpop.f32.mrf.mxu0
        %v2281 = vadd.f32 %v2059, %v2280
        %2282 = vmatmul.bf16.gmra.mxu0 %v2137
        %v2283 = vpop.f32.mrf.mxu0
        %v2284 = vadd.f32 %v2059, %v2283
        %v2285 = vpop.f32.mrf.mxu0
        %v2286 = vadd.f32 %v2059, %v2285
        %2287 = vmatmul.bf16.gmra.mxu0 %v2140
        %v2288 = vpop.f32.mrf.mxu0
        %v2289 = vadd.f32 %v2059, %v2288
        %v2290 = vpop.f32.mrf.mxu0
        %v2291 = vadd.f32 %v2059, %v2290
        %2292 = vmatmul.bf16.gmra.mxu0 %v2143
        %v2293 = vpop.f32.mrf.mxu0
        %v2294 = vadd.f32 %v2059, %v2293
        %v2295 = vpop.f32.mrf.mxu0
        %v2296 = vadd.f32 %v2059, %v2295
        %2297 = vmatmul.bf16.gmra.mxu0 %v2146
        %v2298 = vpop.f32.mrf.mxu0
        %v2299 = vadd.f32 %v2059, %v2298
        %v2300 = vpop.f32.mrf.mxu0
        %v2301 = vadd.f32 %v2059, %v2300
        %2302 = vmatmul.bf16.gmra.mxu0 %v2149
        %v2303 = vpop.f32.mrf.mxu0
        %v2304 = vadd.f32 %v2059, %v2303
        %v2305 = vpop.f32.mrf.mxu0
        %v2306 = vadd.f32 %v2059, %v2305
        %2307 = vmatmul.bf16.gmra.mxu0 %v2152
        %v2308 = vpop.f32.mrf.mxu0
        %v2309 = vadd.f32 %v2059, %v2308
        %v2310 = vpop.f32.mrf.mxu0
        %v2311 = vadd.f32 %v2059, %v2310
        %2312 = vmatmul.bf16.gmra.mxu0 %v2155
        %v2313 = vpop.f32.mrf.mxu0
        %v2314 = vadd.f32 %v2059, %v2313
        %v2315 = vpop.f32.mrf.mxu0
        %v2316 = vadd.f32 %v2059, %v2315
        %2317 = vmatmul.bf16.gmra.mxu0 %v2158
        %v2318 = vpop.f32.mrf.mxu0
        %v2319 = vadd.f32 %v2059, %v2318
        %v2320 = vpop.f32.mrf.mxu0
        %v2321 = vadd.f32 %v2059, %v2320
        %2322 = vmatmul.bf16.gmra.mxu0 %v2161
        %v2323 = vpop.f32.mrf.mxu0
        %v2324 = vadd.f32 %v2059, %v2323
        %v2325 = vpop.f32.mrf.mxu0
        %v2326 = vadd.f32 %v2059, %v2325
        %2327 = vmatmul.bf16.gmra.mxu0 %v2164
        %v2328 = vpop.f32.mrf.mxu0
        %v2329 = vadd.f32 %v2059, %v2328
        %v2330 = vpop.f32.mrf.mxu0
        %v2331 = vadd.f32 %v2059, %v2330
        %2332 = vmatmul.bf16.gmra.mxu0 %v2167
        %v2333 = vpop.f32.mrf.mxu0
        %v2334 = vadd.f32 %v2059, %v2333
        %v2335 = vpop.f32.mrf.mxu0
        %2336 = vdwg.mxu0
        %v2337 = vmax.f32 %v2179, 0.0
        %v2338 = vmax.f32 %v2181, 0.0
        %v2339 = vmax.f32 %v2184, 0.0
        %v2340 = vmax.f32 %v2186, 0.0
        %v2341 = vmax.f32 %v2189, 0.0
        %v2342 = vmax.f32 %v2191, 0.0
        %v2343 = vmax.f32 %v2194, 0.0
        %v2344 = vmax.f32 %v2196, 0.0
        %v2345 = vmax.f32 %v2199, 0.0
        %v2346 = vmax.f32 %v2201, 0.0
        %v2347 = vmax.f32 %v2204, 0.0
        %v2348 = vmax.f32 %v2206, 0.0
        %v2349 = vmax.f32 %v2209, 0.0
        %v2350 = vmax.f32 %v2211, 0.0
        %v2351 = vmax.f32 %v2214, 0.0
        %v2352 = vmax.f32 %v2216, 0.0
        %v2353 = vmax.f32 %v2219, 0.0
        %v2354 = vmax.f32 %v2221, 0.0
        %v2355 = vmax.f32 %v2224, 0.0
        %v2356 = vmax.f32 %v2226, 0.0
        %v2357 = vmax.f32 %v2229, 0.0
        %v2358 = vmax.f32 %v2231, 0.0
        %v2359 = vmax.f32 %v2234, 0.0
        %v2360 = vmax.f32 %v2236, 0.0
        %v2361 = vmax.f32 %v2239, 0.0
        %v2362 = vmax.f32 %v2241, 0.0
        %v2363 = vmax.f32 %v2244, 0.0
        %v2364 = vmax.f32 %v2246, 0.0
        %v2365 = vmax.f32 %v2249, 0.0
        %v2366 = vmax.f32 %v2251, 0.0
        %v2367 = vmax.f32 %v2254, 0.0
        %v2368 = vmax.f32 %v2256, 0.0
        %v2369 = vmax.f32 %v2259, 0.0
        %v2370 = vmax.f32 %v2261, 0.0
        %v2371 = vmax.f32 %v2264, 0.0
        %v2372 = vmax.f32 %v2266, 0.0
        %v2373 = vmax.f32 %v2269, 0.0
        %v2374 = vmax.f32 %v2271, 0.0
        %v2375 = vmax.f32 %v2274, 0.0
        %v2376 = vmax.f32 %v2276, 0.0
        %v2377 = vmax.f32 %v2279, 0.0
        %v2378 = vmax.f32 %v2281, 0.0
        %v2379 = vmax.f32 %v2284, 0.0
        %v2380 = vmax.f32 %v2286, 0.0
        %v2381 = vmax.f32 %v2289, 0.0
        %v2382 = vmax.f32 %v2291, 0.0
        %v2383 = vmax.f32 %v2294, 0.0
        %v2384 = vmax.f32 %v2296, 0.0
        %v2385 = vmax.f32 %v2299, 0.0
        %v2386 = vmax.f32 %v2301, 0.0
        %v2387 = vmax.f32 %v2304, 0.0
        %v2388 = vmax.f32 %v2306, 0.0
        %v2389 = vmax.f32 %v2309, 0.0
        %v2390 = vmax.f32 %v2311, 0.0
        %v2391 = vmax.f32 %v2314, 0.0
        %v2392 = vmax.f32 %v2316, 0.0
        %v2393 = vmax.f32 %v2319, 0.0
        %v2394 = vmax.f32 %v2321, 0.0
        %v2395 = vmax.f32 %v2324, 0.0
        %v2396 = vmax.f32 %v2326, 0.0
        %v2397 = vmax.f32 %v2329, 0.0
        %v2398 = vmax.f32 %v2331, 0.0
        %v2399 = vmax.f32 %v2334, 0.0
        %v2400 = vpack.c.bf16 %v2338, %v2337
        %v2401 = vpack.c.bf16 %v2340, %v2339
        %v2402 = vpack.c.bf16 %v2342, %v2341
        %v2403 = vpack.c.bf16 %v2344, %v2343
        %v2404 = vpack.c.bf16 %v2346, %v2345
        %v2405 = vpack.c.bf16 %v2348, %v2347
        %v2406 = vpack.c.bf16 %v2350, %v2349
        %v2407 = vpack.c.bf16 %v2352, %v2351
        %v2408 = vpack.c.bf16 %v2354, %v2353
        %v2409 = vpack.c.bf16 %v2356, %v2355
        %v2410 = vpack.c.bf16 %v2358, %v2357
        %v2411 = vpack.c.bf16 %v2360, %v2359
        %v2412 = vpack.c.bf16 %v2362, %v2361
        %v2413 = vpack.c.bf16 %v2364, %v2363
        %v2414 = vpack.c.bf16 %v2366, %v2365
        %v2415 = vpack.c.bf16 %v2368, %v2367
        %v2416 = vpack.c.bf16 %v2370, %v2369
        %v2417 = vpack.c.bf16 %v2372, %v2371
        %v2418 = vpack.c.bf16 %v2374, %v2373
        %v2419 = vpack.c.bf16 %v2376, %v2375
        %v2420 = vpack.c.bf16 %v2378, %v2377
        %v2421 = vpack.c.bf16 %v2380, %v2379
        %v2422 = vpack.c.bf16 %v2382, %v2381
        %v2423 = vpack.c.bf16 %v2384, %v2383
        %v2424 = vpack.c.bf16 %v2386, %v2385
        %v2425 = vpack.c.bf16 %v2388, %v2387
        %v2426 = vpack.c.bf16 %v2390, %v2389
        %v2427 = vpack.c.bf16 %v2392, %v2391
        %v2428 = vpack.c.bf16 %v2394, %v2393
        %v2429 = vpack.c.bf16 %v2396, %v2395
        %v2430 = vpack.c.bf16 %v2398, %v2397
        %v2431 = vpack.c.bf16 %v2399, %v2399
        %v2432 = vld [vmem:[%s11] sm:$0xf]
        %v2433 = vld [vmem:[%s11 + $0x4] sm:$0xf]
        %v2434 = vld [vmem:[%s11 + $0x8] sm:$0xf]
        %v2435 = vld [vmem:[%s11 + $0xc] sm:$0xf]
        %v2436 = vld [vmem:[%s11 + $0x10] sm:$0xf]
        %v2437 = vld [vmem:[%s11 + $0x14] sm:$0xf]
        %v2438 = vld [vmem:[%s11 + $0x18] sm:$0xf]
        %v2439 = vld [vmem:[%s11 + $0x1c] sm:$0xf]
        %v2440 = vld [vmem:[%s12] sm:$0x1]
        %v2442 = vperm.slane %v2440, 0
        %v2452 = vunpack.c.l.b16 %v2432
        %v2453 = vunpack.c.l.b16 %v2433
        %v2454 = vunpack.c.l.b16 %v2434
        %v2455 = vunpack.c.l.b16 %v2435
        %v2456 = vunpack.c.l.b16 %v2436
        %v2457 = vunpack.c.l.b16 %v2437
        %v2458 = vunpack.c.l.b16 %v2438
        %v2459 = vunpack.c.l.b16 %v2439
        %v2460 = vpack.c.b16 %v2453, %v2452
        %v2461 = vpack.c.b16 %v2455, %v2454
        %v2462 = vpack.c.b16 %v2457, %v2456
        %v2463 = vpack.c.b16 %v2459, %v2458
        %v2469 = vsel %vm941, %v2400, 0
        %v2472 = vsel %vm941, %v2401, 0
        %v2475 = vsel %vm941, %v2402, 0
        %v2478 = vsel %vm941, %v2403, 0
        %v2481 = vsel %vm941, %v2404, 0
        %v2484 = vsel %vm941, %v2405, 0
        %v2487 = vsel %vm941, %v2406, 0
        %v2490 = vsel %vm941, %v2407, 0
        %v2493 = vsel %vm941, %v2408, 0
        %v2496 = vsel %vm941, %v2409, 0
        %v2499 = vsel %vm941, %v2410, 0
        %v2502 = vsel %vm941, %v2411, 0
        %v2505 = vsel %vm941, %v2412, 0
        %v2508 = vsel %vm941, %v2413, 0
        %v2511 = vsel %vm941, %v2414, 0
        %v2514 = vsel %vm941, %v2415, 0
        %v2517 = vsel %vm941, %v2416, 0
        %v2520 = vsel %vm941, %v2417, 0
        %v2523 = vsel %vm941, %v2418, 0
        %v2526 = vsel %vm941, %v2419, 0
        %v2529 = vsel %vm941, %v2420, 0
        %v2532 = vsel %vm941, %v2421, 0
        %v2535 = vsel %vm941, %v2422, 0
        %v2538 = vsel %vm941, %v2423, 0
        %v2541 = vsel %vm941, %v2424, 0
        %v2544 = vsel %vm941, %v2425, 0
        %v2547 = vsel %vm941, %v2426, 0
        %v2550 = vsel %vm941, %v2427, 0
        %v2553 = vsel %vm941, %v2428, 0
        %v2556 = vsel %vm941, %v2429, 0
        %v2559 = vsel %vm941, %v2430, 0
        %v2562 = vsel %vm941, %v2431, 0
        %2564 = vmatpush.bf16.msra.mxu0 0
        %2565 = vmatpush.bf16.msra.mxu0 0
        %2566 = vmatpush.bf16.msra.mxu0 0
        %2567 = vmatpush.bf16.msra.mxu0 0
        %2568 = vmatpush.bf16.msra.mxu0 %v2463
        %2569 = vmatpush.bf16.msra.mxu0 %v2462
        %2570 = vmatpush.bf16.msra.mxu0 %v2461
        %2571 = vmatpush.bf16.msra.mxu0 %v2460
        %2572 = vmatmul.bf16.gmra.mxu0 %v2469
        %v2573 = vpop.f32.mrf.mxu0
        %v2574 = vadd.f32 %v2442, %v2573
        %v2575 = vpop.f32.mrf.mxu0
        %v2576 = vadd.f32 %v2442, %v2575
        %2577 = vmatmul.bf16.gmra.mxu0 %v2472
        %v2578 = vpop.f32.mrf.mxu0
        %v2579 = vadd.f32 %v2442, %v2578
        %v2580 = vpop.f32.mrf.mxu0
        %v2581 = vadd.f32 %v2442, %v2580
        %2582 = vmatmul.bf16.gmra.mxu0 %v2475
        %v2583 = vpop.f32.mrf.mxu0
        %v2584 = vadd.f32 %v2442, %v2583
        %v2585 = vpop.f32.mrf.mxu0
        %v2586 = vadd.f32 %v2442, %v2585
        %2587 = vmatmul.bf16.gmra.mxu0 %v2478
        %v2588 = vpop.f32.mrf.mxu0
        %v2589 = vadd.f32 %v2442, %v2588
        %v2590 = vpop.f32.mrf.mxu0
        %v2591 = vadd.f32 %v2442, %v2590
        %2592 = vmatmul.bf16.gmra.mxu0 %v2481
        %v2593 = vpop.f32.mrf.mxu0
        %v2594 = vadd.f32 %v2442, %v2593
        %v2595 = vpop.f32.mrf.mxu0
        %v2596 = vadd.f32 %v2442, %v2595
        %2597 = vmatmul.bf16.gmra.mxu0 %v2484
        %v2598 = vpop.f32.mrf.mxu0
        %v2599 = vadd.f32 %v2442, %v2598
        %v2600 = vpop.f32.mrf.mxu0
        %v2601 = vadd.f32 %v2442, %v2600
        %2602 = vmatmul.bf16.gmra.mxu0 %v2487
        %v2603 = vpop.f32.mrf.mxu0
        %v2604 = vadd.f32 %v2442, %v2603
        %v2605 = vpop.f32.mrf.mxu0
        %v2606 = vadd.f32 %v2442, %v2605
        %2607 = vmatmul.bf16.gmra.mxu0 %v2490
        %v2608 = vpop.f32.mrf.mxu0
        %v2609 = vadd.f32 %v2442, %v2608
        %v2610 = vpop.f32.mrf.mxu0
        %v2611 = vadd.f32 %v2442, %v2610
        %2612 = vmatmul.bf16.gmra.mxu0 %v2493
        %v2613 = vpop.f32.mrf.mxu0
        %v2614 = vadd.f32 %v2442, %v2613
        %v2615 = vpop.f32.mrf.mxu0
        %v2616 = vadd.f32 %v2442, %v2615
        %2617 = vmatmul.bf16.gmra.mxu0 %v2496
        %v2618 = vpop.f32.mrf.mxu0
        %v2619 = vadd.f32 %v2442, %v2618
        %v2620 = vpop.f32.mrf.mxu0
        %v2621 = vadd.f32 %v2442, %v2620
        %2622 = vmatmul.bf16.gmra.mxu0 %v2499
        %v2623 = vpop.f32.mrf.mxu0
        %v2624 = vadd.f32 %v2442, %v2623
        %v2625 = vpop.f32.mrf.mxu0
        %v2626 = vadd.f32 %v2442, %v2625
        %2627 = vmatmul.bf16.gmra.mxu0 %v2502
        %v2628 = vpop.f32.mrf.mxu0
        %v2629 = vadd.f32 %v2442, %v2628
        %v2630 = vpop.f32.mrf.mxu0
        %v2631 = vadd.f32 %v2442, %v2630
        %2632 = vmatmul.bf16.gmra.mxu0 %v2505
        %v2633 = vpop.f32.mrf.mxu0
        %v2634 = vadd.f32 %v2442, %v2633
        %v2635 = vpop.f32.mrf.mxu0
        %v2636 = vadd.f32 %v2442, %v2635
        %2637 = vmatmul.bf16.gmra.mxu0 %v2508
        %v2638 = vpop.f32.mrf.mxu0
        %v2639 = vadd.f32 %v2442, %v2638
        %v2640 = vpop.f32.mrf.mxu0
        %v2641 = vadd.f32 %v2442, %v2640
        %2642 = vmatmul.bf16.gmra.mxu0 %v2511
        %v2643 = vpop.f32.mrf.mxu0
        %v2644 = vadd.f32 %v2442, %v2643
        %v2645 = vpop.f32.mrf.mxu0
        %v2646 = vadd.f32 %v2442, %v2645
        %2647 = vmatmul.bf16.gmra.mxu0 %v2514
        %v2648 = vpop.f32.mrf.mxu0
        %v2649 = vadd.f32 %v2442, %v2648
        %v2650 = vpop.f32.mrf.mxu0
        %v2651 = vadd.f32 %v2442, %v2650
        %2652 = vmatmul.bf16.gmra.mxu0 %v2517
        %v2653 = vpop.f32.mrf.mxu0
        %v2654 = vadd.f32 %v2442, %v2653
        %v2655 = vpop.f32.mrf.mxu0
        %v2656 = vadd.f32 %v2442, %v2655
        %2657 = vmatmul.bf16.gmra.mxu0 %v2520
        %v2658 = vpop.f32.mrf.mxu0
        %v2659 = vadd.f32 %v2442, %v2658
        %v2660 = vpop.f32.mrf.mxu0
        %v2661 = vadd.f32 %v2442, %v2660
        %2662 = vmatmul.bf16.gmra.mxu0 %v2523
        %v2663 = vpop.f32.mrf.mxu0
        %v2664 = vadd.f32 %v2442, %v2663
        %v2665 = vpop.f32.mrf.mxu0
        %v2666 = vadd.f32 %v2442, %v2665
        %2667 = vmatmul.bf16.gmra.mxu0 %v2526
        %v2668 = vpop.f32.mrf.mxu0
        %v2669 = vadd.f32 %v2442, %v2668
        %v2670 = vpop.f32.mrf.mxu0
        %v2671 = vadd.f32 %v2442, %v2670
        %2672 = vmatmul.bf16.gmra.mxu0 %v2529
        %v2673 = vpop.f32.mrf.mxu0
        %v2674 = vadd.f32 %v2442, %v2673
        %v2675 = vpop.f32.mrf.mxu0
        %v2676 = vadd.f32 %v2442, %v2675
        %2677 = vmatmul.bf16.gmra.mxu0 %v2532
        %v2678 = vpop.f32.mrf.mxu0
        %v2679 = vadd.f32 %v2442, %v2678
        %v2680 = vpop.f32.mrf.mxu0
        %v2681 = vadd.f32 %v2442, %v2680
        %2682 = vmatmul.bf16.gmra.mxu0 %v2535
        %v2683 = vpop.f32.mrf.mxu0
        %v2684 = vadd.f32 %v2442, %v2683
        %v2685 = vpop.f32.mrf.mxu0
        %v2686 = vadd.f32 %v2442, %v2685
        %2687 = vmatmul.bf16.gmra.mxu0 %v2538
        %v2688 = vpop.f32.mrf.mxu0
        %v2689 = vadd.f32 %v2442, %v2688
        %v2690 = vpop.f32.mrf.mxu0
        %v2691 = vadd.f32 %v2442, %v2690
        %2692 = vmatmul.bf16.gmra.mxu0 %v2541
        %v2693 = vpop.f32.mrf.mxu0
        %v2694 = vadd.f32 %v2442, %v2693
        %v2695 = vpop.f32.mrf.mxu0
        %v2696 = vadd.f32 %v2442, %v2695
        %2697 = vmatmul.bf16.gmra.mxu0 %v2544
        %v2698 = vpop.f32.mrf.mxu0
        %v2699 = vadd.f32 %v2442, %v2698
        %v2700 = vpop.f32.mrf.mxu0
        %v2701 = vadd.f32 %v2442, %v2700
        %2702 = vmatmul.bf16.gmra.mxu0 %v2547
        %v2703 = vpop.f32.mrf.mxu0
        %v2704 = vadd.f32 %v2442, %v2703
        %v2705 = vpop.f32.mrf.mxu0
        %v2706 = vadd.f32 %v2442, %v2705
        %2707 = vmatmul.bf16.gmra.mxu0 %v2550
        %v2708 = vpop.f32.mrf.mxu0
        %v2709 = vadd.f32 %v2442, %v2708
        %v2710 = vpop.f32.mrf.mxu0
        %v2711 = vadd.f32 %v2442, %v2710
        %2712 = vmatmul.bf16.gmra.mxu0 %v2553
        %v2713 = vpop.f32.mrf.mxu0
        %v2714 = vadd.f32 %v2442, %v2713
        %v2715 = vpop.f32.mrf.mxu0
        %v2716 = vadd.f32 %v2442, %v2715
        %2717 = vmatmul.bf16.gmra.mxu0 %v2556
        %v2718 = vpop.f32.mrf.mxu0
        %v2719 = vadd.f32 %v2442, %v2718
        %v2720 = vpop.f32.mrf.mxu0
        %v2721 = vadd.f32 %v2442, %v2720
        %2722 = vmatmul.bf16.gmra.mxu0 %v2559
        %v2723 = vpop.f32.mrf.mxu0
        %v2724 = vadd.f32 %v2442, %v2723
        %v2725 = vpop.f32.mrf.mxu0
        %v2726 = vadd.f32 %v2442, %v2725
        %2727 = vmatmul.bf16.gmra.mxu0 %v2562
        %v2728 = vpop.f32.mrf.mxu0
        %v2729 = vadd.f32 %v2442, %v2728
        %v2730 = vpop.f32.mrf.mxu0
        %2731 = vdwg.mxu0
        %2732 = vst [vmem:[%s467] sm:$0xff] %v2574
        %2733 = vst [vmem:[%s467 + $0x8] sm:$0xff] %v2576
        %2734 = vst [vmem:[%s467 + $0x10] sm:$0xff] %v2579
        %2735 = vst [vmem:[%s467 + $0x18] sm:$0xff] %v2581
        %2736 = vst [vmem:[%s467 + $0x20] sm:$0xff] %v2584
        %2737 = vst [vmem:[%s467 + $0x28] sm:$0xff] %v2586
        %2738 = vst [vmem:[%s467 + $0x30] sm:$0xff] %v2589
        %2739 = vst [vmem:[%s467 + $0x38] sm:$0xff] %v2591
        %2740 = vst [vmem:[%s467 + $0x40] sm:$0xff] %v2594
        %2741 = vst [vmem:[%s467 + $0x48] sm:$0xff] %v2596
        %2742 = vst [vmem:[%s467 + $0x50] sm:$0xff] %v2599
        %2743 = vst [vmem:[%s467 + $0x58] sm:$0xff] %v2601
        %2744 = vst [vmem:[%s467 + $0x60] sm:$0xff] %v2604
        %2745 = vst [vmem:[%s467 + $0x68] sm:$0xff] %v2606
        %2746 = vst [vmem:[%s467 + $0x70] sm:$0xff] %v2609
        %2747 = vst [vmem:[%s467 + $0x78] sm:$0xff] %v2611
        %2748 = vst [vmem:[%s467 + $0x80] sm:$0xff] %v2614
        %2749 = vst [vmem:[%s467 + $0x88] sm:$0xff] %v2616
        %2750 = vst [vmem:[%s467 + $0x90] sm:$0xff] %v2619
        %2751 = vst [vmem:[%s467 + $0x98] sm:$0xff] %v2621
        %2752 = vst [vmem:[%s467 + $0xa0] sm:$0xff] %v2624
        %2753 = vst [vmem:[%s467 + $0xa8] sm:$0xff] %v2626
        %2754 = vst [vmem:[%s467 + $0xb0] sm:$0xff] %v2629
        %2755 = vst [vmem:[%s467 + $0xb8] sm:$0xff] %v2631
        %2756 = vst [vmem:[%s467 + $0xc0] sm:$0xff] %v2634
        %2757 = vst [vmem:[%s467 + $0xc8] sm:$0xff] %v2636
        %2758 = vst [vmem:[%s467 + $0xd0] sm:$0xff] %v2639
        %2759 = vst [vmem:[%s467 + $0xd8] sm:$0xff] %v2641
        %2760 = vst [vmem:[%s467 + $0xe0] sm:$0xff] %v2644
        %2761 = vst [vmem:[%s467 + $0xe8] sm:$0xff] %v2646
        %2762 = vst [vmem:[%s467 + $0xf0] sm:$0xff] %v2649
        %2763 = vst [vmem:[%s467 + $0xf8] sm:$0xff] %v2651
        %2764 = vst [vmem:[%s467 + $0x100] sm:$0xff] %v2654
        %2765 = vst [vmem:[%s467 + $0x108] sm:$0xff] %v2656
        %2766 = vst [vmem:[%s467 + $0x110] sm:$0xff] %v2659
        %2767 = vst [vmem:[%s467 + $0x118] sm:$0xff] %v2661
        %2768 = vst [vmem:[%s467 + $0x120] sm:$0xff] %v2664
        %2769 = vst [vmem:[%s467 + $0x128] sm:$0xff] %v2666
        %2770 = vst [vmem:[%s467 + $0x130] sm:$0xff] %v2669
        %2771 = vst [vmem:[%s467 + $0x138] sm:$0xff] %v2671
        %2772 = vst [vmem:[%s467 + $0x140] sm:$0xff] %v2674
        %2773 = vst [vmem:[%s467 + $0x148] sm:$0xff] %v2676
        %2774 = vst [vmem:[%s467 + $0x150] sm:$0xff] %v2679
        %2775 = vst [vmem:[%s467 + $0x158] sm:$0xff] %v2681
        %2776 = vst [vmem:[%s467 + $0x160] sm:$0xff] %v2684
        %2777 = vst [vmem:[%s467 + $0x168] sm:$0xff] %v2686
        %2778 = vst [vmem:[%s467 + $0x170] sm:$0xff] %v2689
        %2779 = vst [vmem:[%s467 + $0x178] sm:$0xff] %v2691
        %2780 = vst [vmem:[%s467 + $0x180] sm:$0xff] %v2694
        %2781 = vst [vmem:[%s467 + $0x188] sm:$0xff] %v2696
        %2782 = vst [vmem:[%s467 + $0x190] sm:$0xff] %v2699
        %2783 = vst [vmem:[%s467 + $0x198] sm:$0xff] %v2701
        %2784 = vst [vmem:[%s467 + $0x1a0] sm:$0xff] %v2704
        %2785 = vst [vmem:[%s467 + $0x1a8] sm:$0xff] %v2706
        %2786 = vst [vmem:[%s467 + $0x1b0] sm:$0xff] %v2709
        %2787 = vst [vmem:[%s467 + $0x1b8] sm:$0xff] %v2711
        %2788 = vst [vmem:[%s467 + $0x1c0] sm:$0xff] %v2714
        %2789 = vst [vmem:[%s467 + $0x1c8] sm:$0xff] %v2716
        %2790 = vst [vmem:[%s467 + $0x1d0] sm:$0xff] %v2719
        %2791 = vst [vmem:[%s467 + $0x1d8] sm:$0xff] %v2721
        %2792 = vst [vmem:[%s467 + $0x1e0] sm:$0xff] %v2724
        %2793 = vst [vmem:[%s467 + $0x1e8] sm:$0xff] %v2726
        %2794 = vst [vmem:[%s467 + $0x1f0] sm:$0xff] %v2729
        %s2795 = sand.u32 %s316, 1
        %s2796 = scalar_lea.sflag [#allocation4], %s2795
        %s2797 = sand.u32 %s316, 1
        %s2798 = smul.addr %s2797, 504
        %s2799 = scalar_lea.vmem [#allocation5], %s2798
        // Predicated region
        $region77: #{tpu_custom_call.1} parent=71 // pred_check
          %p2800 = pneg %p326
        $region78: #{tpu_custom_call.1} parent=71 // pred_check_branch
          %2802 = sbr.rel (%p2800) target = $region80
        $region79: #{tpu_custom_call.1} parent=71 // pred_region
          %s2803 = smul.u32 63, %s30
          %s2804 = ssub.s32 125, %s2803
          %p2805 = scmp.lt.s32.totalorder %s2804, 63
          %s2806 = scalar_select %p2805, %s2804, 63
          %s2807 = smul.u32 8, %s2806
          %s2808 = ssub.s32 504, %s2807
          %s2809 = sshll.u32 %s2808, 4
          %2810 = vsyncadd %s2796, %s2809
          %p2811 = scmp.ne.s32.totalorder 0, %s2807
          %s2812 = smul.addr %s2803, 8
          %s2813 = scalar_lea.hbm %s13, %s2812
          %s2814 = smul.u32 8, %s2806
          %s2815 = sshll.u32 %s2799, 4
          %s2816 = int_to_ptr.vmem [resolvable:$true] %s2815
          %s2817 = sshll.u32 %s2813, 4
          %s2818 = int_to_ptr.hbm [resolvable:$true] %s2817
          %s2819 = sshll.u32 %s2814, 4
          %2823 = dma.vmem_to_hbm [thread:$0]  (%p2811), %s2816, %s2819, %s2818, %s2796, 128, 128, 8
        $region80: #{tpu_custom_call.1} parent=71 // pred_fallthru
          _
      $region72: #{tpu_custom_call.1} parent=5 // pred_fallthru
        _
      %p2824 = scmp.le.s32.totalorder 2, %s25
      // Predicated region
      $region81: #{tpu_custom_call.1} parent=5 // pred_check
        %p2825 = pneg %p2824
      $region82: #{tpu_custom_call.1} parent=5 // pred_check_branch
        %2827 = sbr.rel (%p2825) target = $region84
      $region83: #{tpu_custom_call.1} parent=5 // pred_region
        %s2828 = ssub.s32 %s25, 2
        // Predicated region
        $region85: #{tpu_custom_call.1} parent=83 // pred_check
          %p2829 = pneg %p332
        $region86: #{tpu_custom_call.1} parent=83 // pred_check_branch
          %2831 = sbr.rel (%p2829) target = $region88
        $region87: #{tpu_custom_call.1} parent=83 // pred_region
          %s2832 = sand.u32 %s317, 1
          %s2833 = scalar_lea.sflag [#allocation4], %s2832
          %s2834 = sand.u32 %s317, 1
          %s2835 = smul.addr %s2834, 504
          %s2836 = scalar_lea.vmem [#allocation5], %s2835
          %2838 = dma.done %s2833, 8064
        $region88: #{tpu_custom_call.1} parent=83 // pred_fallthru
          _
      $region84: #{tpu_custom_call.1} parent=5 // pred_fallthru
        _
    $region6: #{tpu_custom_call.1} parent=1 // loop_footer
      %s29 = sadd.s32 1, %s25
    $region7: #{tpu_custom_call.1} parent=1 // loop_footer_branch
      %24 = sbr.rel target = $region3
    $region8: #{tpu_custom_call.1} parent=1 // loop_exit
      _
    %2839 = vsyncpa [#allocation3], 1
    %s2840 = scalar_lea.sflag [#allocation3], 1
    %2841 = vsyncpa %s2840, 1
    %2842 = vsyncpa [#allocation4], 1
    %s2843 = scalar_lea.sflag [#allocation4], 1
    %2844 = vsyncpa %s2843, 1

</llo_original>
